<compile_context>
chip_gen: v7x
topology: tpu7x:2x2x1
jax: 0.10.0
libtpu: 0.0.40
codegen_flags: <defaults>
</compile_context>

<pallas_src>
import math
import functools

import jax
import jax.numpy as jnp
from jax.experimental import pallas as pl
from jax.experimental.pallas import tpu as pltpu


def _round_up(x, m):
    return ((x + m - 1) // m) * m


def _pad_gate_weight(w_t, h, hp):
    """(H, 3H) gate-ordered (r,z,n) -> (Hp, 3Hp) with gate g placed at g*Hp."""
    out = jnp.zeros((hp, 3 * hp), w_t.dtype)
    for g in range(3):
        out = out.at[:h, g * hp: g * hp + h].set(w_t[:, g * h:(g + 1) * h])
    return out


def _pad_gate_bias(b, h, hp):
    out = jnp.zeros((3 * hp,), b.dtype)
    for g in range(3):
        out = out.at[g * hp: g * hp + h].set(b[g * h:(g + 1) * h])
    return out


# ---------------------------------------------------------------------------
# Pallas kernel: sequential GRU recurrence (x-side gates precomputed as gi).
# ---------------------------------------------------------------------------
def _gru_recurrent_kernel(gi_ref, w_hh_ref, b_hhn_ref, h0_ref,
                          out_ref, hn_ref, h_scratch,
                          *, seq_len, t_blk, hp):
    """Grid = (batch_blocks [parallel], time_blocks [arbitrary]).

    gi_ref   : (T_BLK, B_BLK, 3*Hp) f32  x@W_ih^T + b_ih (+ b_hh for r,z gates)
    w_hh_ref : (Hp, 3*Hp)          bf16  transposed hidden weights (resident)
    b_hhn_ref: (1, Hp)             f32   b_hh for the n gate only
    h0_ref   : (B_BLK, Hp)         f32   initial hidden for this batch block
    out_ref  : (T_BLK, B_BLK, Hp)  f32   per-step hidden outputs
    hn_ref   : (B_BLK, Hp)         f32   final hidden (resident, written once)
    h_scratch: (B_BLK, Hp)         f32   recurrent state carried across blocks
    """
    tb = pl.program_id(1)

    @pl.when(tb == 0)
    def _():
        h_scratch[...] = h0_ref[...]

    w_hh = w_hh_ref[...]                     # resident bf16 weights
    b_hhn = b_hhn_ref[...]                   # (1, Hp)
    t0 = tb * t_blk
    needs_mask = (seq_len % t_blk) != 0      # static: only mask if S was padded

    def step(j, h):
        gi = gi_ref[j]                                       # (B_BLK, 3Hp) f32
        gh = jnp.dot(h.astype(w_hh.dtype), w_hh,             # one serial matmul
                     preferred_element_type=jnp.float32)
        r = jax.nn.sigmoid(gi[:, :hp] + gh[:, :hp])
        z = jax.nn.sigmoid(gi[:, hp:2 * hp] + gh[:, hp:2 * hp])
        n = jnp.tanh(gi[:, 2 * hp:] + r * (gh[:, 2 * hp:] + b_hhn))
        h_new = n + z * (h - n)                              # == (1-z)*n + z*h
        if needs_mask:                                       # padded timesteps
            h_new = jnp.where(t0 + j < seq_len, h_new, h)
        out_ref[j] = h_new
        return h_new

    h_last = jax.lax.fori_loop(0, t_blk, step, h_scratch[...], unroll=True)
    h_scratch[...] = h_last

    @pl.when(tb == pl.num_programs(1) - 1)
    def _():
        hn_ref[...] = h_last


def _gru_layer(gi, w_hh_t, b_hhn, h0, *, seq_len, t_blk, b_blk, hp):
    """gi: (Sp, Bp, 3Hp) f32 time-major. Returns (out (Sp,Bp,Hp), hn (Bp,Hp))."""
    sp, bp, g = gi.shape
    nb, nt = bp // b_blk, sp // t_blk

    kernel = functools.partial(_gru_recurrent_kernel,
                               seq_len=seq_len, t_blk=t_blk, hp=hp)
    out, hn = pl.pallas_call(
        kernel,
        out_shape=(jax.ShapeDtypeStruct((sp, bp, hp), jnp.float32),
                   jax.ShapeDtypeStruct((bp, hp), jnp.float32)),
        grid_spec=pltpu.PrefetchScalarGridSpec(
            num_scalar_prefetch=0,
            grid=(nb, nt),
            in_specs=[
                pl.BlockSpec((t_blk, b_blk, g), lambda b, t: (t, b, 0)),  # gi
                pl.BlockSpec((hp, g), lambda b, t: (0, 0)),               # W_hh^T
                pl.BlockSpec((1, hp), lambda b, t: (0, 0)),               # b_hh_n
                pl.BlockSpec((b_blk, hp), lambda b, t: (b, 0)),           # h0
            ],
            out_specs=[
                pl.BlockSpec((t_blk, b_blk, hp), lambda b, t: (t, b, 0)),  # out
                pl.BlockSpec((b_blk, hp), lambda b, t: (b, 0)),            # hn
            ],
            scratch_shapes=[pltpu.VMEM((b_blk, hp), jnp.float32)],
        ),
        compiler_params=pltpu.CompilerParams(
            dimension_semantics=("parallel", "arbitrary"),   # batch || , time seq
            vmem_limit_bytes=32 * 1024 * 1024),
    )(gi, w_hh_t, b_hhn, h0)
    return out, hn


class EncoderRNNPallas:
    """Mirrors EncoderRNN: Embedding(input_size, H) + GRU(H, H, n_layers, batch_first)."""

    def __init__(self, input_size, hidden_size, n_layers=1, t_block=8,
                 key=jax.random.PRNGKey(0)):
        self.input_size = input_size
        self.hidden_size = hidden_size
        self.n_layers = n_layers
        self.t_block = t_block
        self.hp = _round_up(hidden_size, 128)      # lane-aligned hidden dim

        H, Hp = hidden_size, self.hp
        keys = jax.random.split(key, 1 + 4 * n_layers)

        # nn.Embedding default init: N(0, 1)
        self.embedding = jax.random.normal(keys[0], (input_size, H), jnp.float32)

        # nn.GRU default init: U(-k, k), k = 1/sqrt(H); gate order r, z, n.
        k = 1.0 / math.sqrt(hidden_size)
        self.raw = []             # torch-layout params for the pure-JAX reference
        self.w_ih_t_pad = []      # (Hp, 3Hp) bf16
        self.w_hh_t_pad = []      # (Hp, 3Hp) bf16
        self.bias_gi_pad = []     # (1, 1, 3Hp) f32: b_ih (all) + b_hh (r, z)
        self.b_hhn_pad = []       # (1, Hp)    f32: b_hh (n gate)
        for l in range(n_layers):
            k0, k1, k2, k3 = keys[1 + 4 * l: 5 + 4 * l]
            w_ih = jax.random.uniform(k0, (3 * H, H), minval=-k, maxval=k)
            w_hh = jax.random.uniform(k1, (3 * H, H), minval=-k, maxval=k)
            b_ih = jax.random.uniform(k2, (3 * H,), minval=-k, maxval=k)
            b_hh = jax.random.uniform(k3, (3 * H,), minval=-k, maxval=k)
            self.raw.append((w_ih, w_hh, b_ih, b_hh))

            self.w_ih_t_pad.append(
                _pad_gate_weight(w_ih.T, H, Hp).astype(jnp.bfloat16))
            self.w_hh_t_pad.append(
                _pad_gate_weight(w_hh.T, H, Hp).astype(jnp.bfloat16))
            bias_gi = b_ih + jnp.concatenate(
                [b_hh[:2 * H], jnp.zeros((H,), jnp.float32)])
            self.bias_gi_pad.append(
                _pad_gate_bias(bias_gi, H, Hp).reshape(1, 1, 3 * Hp))
            self.b_hhn_pad.append(
                jnp.zeros((1, Hp), jnp.float32).at[0, :H].set(b_hh[2 * H:]))

    def init_hidden(self, batch_size):
        return jnp.zeros((self.n_layers, batch_size, self.hidden_size), jnp.float32)

    def forward(self, word_inputs, hidden):
        """word_inputs: (B, S) int32 token ids; hidden: (n_layers, B, H).

        Returns (output (B, S, H), hidden (n_layers, B, H)) — same as the
        PyTorch module with batch_first=True.
        """
        B, S = word_inputs.shape
        H, Hp = self.hidden_size, self.hp
        Bp = _round_up(B, 8)                       # f32 sublane alignment
        t_blk = self.t_block
        Sp = _round_up(S, t_blk)
        b_blk = 8                                  # batch tile on the parallel axis

        # Embedding lookup (gather) — plain-JAX glue; then time-major + padding.
        embedded = jnp.take(self.embedding, word_inputs, axis=0)        # (B,S,H)
        x = jnp.transpose(embedded, (1, 0, 2))                          # (S,B,H)
        x = jnp.pad(x, ((0, Sp - S), (0, Bp - B), (0, Hp - H)))         # (Sp,Bp,Hp)
        h_pad = jnp.pad(hidden, ((0, 0), (0, Bp - B), (0, Hp - H)))

        new_hidden = []
        for l in range(self.n_layers):
            # Hoisted input-side projection for ALL timesteps: one big bf16 matmul.
            gi = jnp.einsum('sbh,hg->sbg', x.astype(jnp.bfloat16),
                            self.w_ih_t_pad[l],
                            preferred_element_type=jnp.float32) + self.bias_gi_pad[l]
            x, h_n = _gru_layer(gi, self.w_hh_t_pad[l], self.b_hhn_pad[l],
                                h_pad[l], seq_len=S, t_blk=t_blk,
                                b_blk=b_blk, hp=Hp)
            new_hidden.append(h_n)

        output = jnp.transpose(x[:S, :B, :H], (1, 0, 2))                # (B,S,H)
        hidden_out = jnp.stack(new_hidden, axis=0)[:, :B, :H]           # (L,B,H)
        return output, hidden_out

    def reference_forward(self, word_inputs, hidden):
        """Pure-JAX f32 reference mirroring torch.nn.GRU (batch_first=True)."""
        x = jnp.take(self.embedding, word_inputs, axis=0)   # (B,S,H)
        B, S, H = x.shape
        hs = []
        for l, (w_ih, w_hh, b_ih, b_hh) in enumerate(self.raw):
            h = hidden[l]
            outs = []
            for t in range(S):
                gi = x[:, t, :] @ w_ih.T + b_ih
                gh = h @ w_hh.T + b_hh
                i_r, i_z, i_n = jnp.split(gi, 3, axis=1)
                h_r, h_z, h_n = jnp.split(gh, 3, axis=1)
                r = jax.nn.sigmoid(i_r + h_r)
                z = jax.nn.sigmoid(i_z + h_z)
                n = jnp.tanh(i_n + r * h_n)
                h = (1.0 - z) * n + z * h
                outs.append(h)
            x = jnp.stack(outs, axis=1)
            hs.append(h)
        return x, jnp.stack(hs, axis=0)


if __name__ == "__main__":
    INPUT_SIZE = 20    # vocab size
    HIDDEN = 32
    N_LAYERS = 1
    BATCH = 2
    SEQ = 8

    root = jax.random.PRNGKey(0)
    k_params, k_tokens = jax.random.split(root)

    enc = EncoderRNNPallas(INPUT_SIZE, HIDDEN, n_layers=N_LAYERS, key=k_params)

    word_inputs = jax.random.randint(k_tokens, (BATCH, SEQ), 0, INPUT_SIZE,
                                     dtype=jnp.int32)
    hidden0 = enc.init_hidden(BATCH)

    output, hidden = enc.forward(word_inputs, hidden0)
    output = jax.block_until_ready(output)
    hidden = jax.block_until_ready(hidden)

    assert output.shape == (BATCH, SEQ, HIDDEN)
    assert hidden.shape == (N_LAYERS, BATCH, HIDDEN)
    assert bool(jnp.all(jnp.isfinite(output))) and bool(jnp.all(jnp.isfinite(hidden)))

    # Numerical check vs pure-JAX f32 reference (kernel uses bf16 MXU inputs,
    # so allow small rounding differences).
    ref_out, ref_hid = enc.reference_forward(word_inputs, hidden0)
    max_err = float(jnp.max(jnp.abs(output - ref_out)))
    max_err_h = float(jnp.max(jnp.abs(hidden - ref_hid)))
    assert max_err < 1e-1 and max_err_h < 1e-1, (max_err, max_err_h)

    print("KERNEL_OK")
</pallas_src>

<mosaic_0001>
module attributes {stable_mosaic.version = 11 : i64} {
  func.func @_gru_recurrent_kernel(%arg0: i32, %arg1: i32, %arg2: memref<8x8x384xf32, #tpu.memory_space<vmem>>, %arg3: memref<128x384xbf16, #tpu.memory_space<vmem>>, %arg4: memref<1x128xf32, #tpu.memory_space<vmem>>, %arg5: memref<8x128xf32, #tpu.memory_space<vmem>>, %arg6: memref<8x8x128xf32, #tpu.memory_space<vmem>>, %arg7: memref<8x128xf32, #tpu.memory_space<vmem>>, %arg8: memref<8x128xf32, #tpu.memory_space<vmem>>) attributes {dimension_semantics = [#tpu.dimension_semantics<parallel>, #tpu.dimension_semantics<arbitrary>], iteration_bounds = array<i64: 1, 1>, scalar_prefetch = 0 : i64, scratch_operands = 1 : i64, tpu.core_type = #tpu.core_type<tc>, window_params = [{transform_indices = @transform_0, window_bounds = array<i64: 8, 8, 384>}, {pipeline_mode = #tpu.pipeline_mode<synchronous>, transform_indices = @transform_1, window_bounds = array<i64: 128, 384>}, {pipeline_mode = #tpu.pipeline_mode<synchronous>, transform_indices = @transform_2, window_bounds = array<i64: 1, 128>}, {transform_indices = @transform_3, window_bounds = array<i64: 8, 128>}, {transform_indices = @transform_4, window_bounds = array<i64: 8, 8, 128>}, {transform_indices = @transform_5, window_bounds = array<i64: 8, 128>}]} {
    %c0_i32 = arith.constant 0 : i32
    %0 = arith.cmpi eq, %arg1, %c0_i32 : i32
    %1 = arith.extui %0 : i1 to i32
    %c0_i32_0 = arith.constant 0 : i32
    %2 = arith.cmpi ne, %1, %c0_i32_0 : i32
    scf.if %2 {
      %c0_66 = arith.constant 0 : index
      %c0_67 = arith.constant 0 : index
      %290 = vector.load %arg5[%c0_66, %c0_67] : memref<8x128xf32, #tpu.memory_space<vmem>>, vector<8x128xf32>
      %c0_68 = arith.constant 0 : index
      %c0_69 = arith.constant 0 : index
      %291 = vector.load %arg8[%c0_68, %c0_69] : memref<8x128xf32, #tpu.memory_space<vmem>>, vector<8x128xf32>
      tpu.vector_store %arg8[%c0_68, %c0_69], %290 {strides = array<i32>} : memref<8x128xf32, #tpu.memory_space<vmem>>, vector<8x128xf32>,
    } else {
    }
    %c0 = arith.constant 0 : index
    %c0_1 = arith.constant 0 : index
    %3 = vector.load %arg3[%c0, %c0_1] : memref<128x384xbf16, #tpu.memory_space<vmem>>, vector<128x384xbf16>
    %c0_2 = arith.constant 0 : index
    %c0_3 = arith.constant 0 : index
    %4 = vector.load %arg4[%c0_2, %c0_3] : memref<1x128xf32, #tpu.memory_space<vmem>>, vector<1x128xf32>
    %c0_4 = arith.constant 0 : index
    %c0_5 = arith.constant 0 : index
    %5 = vector.load %arg8[%c0_4, %c0_5] : memref<8x128xf32, #tpu.memory_space<vmem>>, vector<8x128xf32>
    %c0_i32_6 = arith.constant 0 : i32
    %6 = arith.index_cast %c0_i32_6 : i32 to index
    %c0_7 = arith.constant 0 : index
    %c0_8 = arith.constant 0 : index
    %7 = vector.load %arg2[%6, %c0_7, %c0_8] : memref<8x8x384xf32, #tpu.memory_space<vmem>>, vector<1x8x384xf32>
    %8 = vector.shape_cast %7 : vector<1x8x384xf32> to vector<8x384xf32>
    %9 = arith.truncf %5 : vector<8x128xf32> to vector<8x128xbf16>
    %cst = arith.constant dense<0.000000e+00> : vector<8x384xf32>
    %10 = tpu.matmul %9, %3, %cst {dimension_numbers = #tpu.dot_dimension_numbers<[1], [0], [0], [1], [0, 0, 1, 1], [], []>} : vector<8x128xbf16>, vector<128x384xbf16>, vector<8x384xf32> -> vector<8x384xf32>
    %11 = vector.extract_strided_slice %8 {offsets = [0, 0], sizes = [8, 128], strides = [1, 1]} : vector<8x384xf32> to vector<8x128xf32>
    %12 = vector.extract_strided_slice %10 {offsets = [0, 0], sizes = [8, 128], strides = [1, 1]} : vector<8x384xf32> to vector<8x128xf32>
    %13 = arith.addf %11, %12 : vector<8x128xf32>
    %14 = arith.negf %13 : vector<8x128xf32>
    %15 = math.exp %14 : vector<8x128xf32>
    %cst_9 = arith.constant 1.000000e+00 : f32
    %16 = vector.broadcast %cst_9 : f32 to vector<8x128xf32>
    %17 = arith.addf %16, %15 : vector<8x128xf32>
    %18 = arith.divf %16, %17 : vector<8x128xf32>
    %19 = vector.extract_strided_slice %8 {offsets = [0, 128], sizes = [8, 128], strides = [1, 1]} : vector<8x384xf32> to vector<8x128xf32>
    %20 = vector.extract_strided_slice %10 {offsets = [0, 128], sizes = [8, 128], strides = [1, 1]} : vector<8x384xf32> to vector<8x128xf32>
    %21 = arith.addf %19, %20 : vector<8x128xf32>
    %22 = arith.negf %21 : vector<8x128xf32>
    %23 = math.exp %22 : vector<8x128xf32>
    %cst_10 = arith.constant 1.000000e+00 : f32
    %24 = vector.broadcast %cst_10 : f32 to vector<8x128xf32>
    %25 = arith.addf %24, %23 : vector<8x128xf32>
    %26 = arith.divf %24, %25 : vector<8x128xf32>
    %27 = vector.extract_strided_slice %8 {offsets = [0, 256], sizes = [8, 128], strides = [1, 1]} : vector<8x384xf32> to vector<8x128xf32>
    %28 = vector.extract_strided_slice %10 {offsets = [0, 256], sizes = [8, 128], strides = [1, 1]} : vector<8x384xf32> to vector<8x128xf32>
    %29 = vector.broadcast %4 : vector<1x128xf32> to vector<8x128xf32>
    %30 = arith.addf %28, %29 : vector<8x128xf32>
    %31 = arith.mulf %18, %30 : vector<8x128xf32>
    %32 = arith.addf %27, %31 : vector<8x128xf32>
    %33 = math.tanh %32 : vector<8x128xf32>
    %34 = arith.subf %5, %33 : vector<8x128xf32>
    %35 = arith.mulf %26, %34 : vector<8x128xf32>
    %36 = arith.addf %33, %35 : vector<8x128xf32>
    %37 = arith.index_cast %c0_i32_6 : i32 to index
    %c0_11 = arith.constant 0 : index
    %c0_12 = arith.constant 0 : index
    %38 = vector.load %arg6[%37, %c0_11, %c0_12] : memref<8x8x128xf32, #tpu.memory_space<vmem>>, vector<1x8x128xf32>
    %39 = vector.shape_cast %38 : vector<1x8x128xf32> to vector<8x128xf32>
    %40 = vector.shape_cast %36 : vector<8x128xf32> to vector<1x8x128xf32>
    tpu.vector_store %arg6[%37, %c0_11, %c0_12], %40 {strides = array<i32>} : memref<8x8x128xf32, #tpu.memory_space<vmem>>, vector<1x8x128xf32>,
    %c1_i32 = arith.constant 1 : i32
    %41 = arith.index_cast %c1_i32 : i32 to index
    %c0_13 = arith.constant 0 : index
    %c0_14 = arith.constant 0 : index
    %42 = vector.load %arg2[%41, %c0_13, %c0_14] : memref<8x8x384xf32, #tpu.memory_space<vmem>>, vector<1x8x384xf32>
    %43 = vector.shape_cast %42 : vector<1x8x384xf32> to vector<8x384xf32>
    %44 = arith.truncf %36 : vector<8x128xf32> to vector<8x128xbf16>
    %cst_15 = arith.constant dense<0.000000e+00> : vector<8x384xf32>
    %45 = tpu.matmul %44, %3, %cst_15 {dimension_numbers = #tpu.dot_dimension_numbers<[1], [0], [0], [1], [0, 0, 1, 1], [], []>} : vector<8x128xbf16>, vector<128x384xbf16>, vector<8x384xf32> -> vector<8x384xf32>
    %46 = vector.extract_strided_slice %43 {offsets = [0, 0], sizes = [8, 128], strides = [1, 1]} : vector<8x384xf32> to vector<8x128xf32>
    %47 = vector.extract_strided_slice %45 {offsets = [0, 0], sizes = [8, 128], strides = [1, 1]} : vector<8x384xf32> to vector<8x128xf32>
    %48 = arith.addf %46, %47 : vector<8x128xf32>
    %49 = arith.negf %48 : vector<8x128xf32>
    %50 = math.exp %49 : vector<8x128xf32>
    %cst_16 = arith.constant 1.000000e+00 : f32
    %51 = vector.broadcast %cst_16 : f32 to vector<8x128xf32>
    %52 = arith.addf %51, %50 : vector<8x128xf32>
    %53 = arith.divf %51, %52 : vector<8x128xf32>
    %54 = vector.extract_strided_slice %43 {offsets = [0, 128], sizes = [8, 128], strides = [1, 1]} : vector<8x384xf32> to vector<8x128xf32>
    %55 = vector.extract_strided_slice %45 {offsets = [0, 128], sizes = [8, 128], strides = [1, 1]} : vector<8x384xf32> to vector<8x128xf32>
    %56 = arith.addf %54, %55 : vector<8x128xf32>
    %57 = arith.negf %56 : vector<8x128xf32>
    %58 = math.exp %57 : vector<8x128xf32>
    %cst_17 = arith.constant 1.000000e+00 : f32
    %59 = vector.broadcast %cst_17 : f32 to vector<8x128xf32>
    %60 = arith.addf %59, %58 : vector<8x128xf32>
    %61 = arith.divf %59, %60 : vector<8x128xf32>
    %62 = vector.extract_strided_slice %43 {offsets = [0, 256], sizes = [8, 128], strides = [1, 1]} : vector<8x384xf32> to vector<8x128xf32>
    %63 = vector.extract_strided_slice %45 {offsets = [0, 256], sizes = [8, 128], strides = [1, 1]} : vector<8x384xf32> to vector<8x128xf32>
    %64 = vector.broadcast %4 : vector<1x128xf32> to vector<8x128xf32>
    %65 = arith.addf %63, %64 : vector<8x128xf32>
    %66 = arith.mulf %53, %65 : vector<8x128xf32>
    %67 = arith.addf %62, %66 : vector<8x128xf32>
    %68 = math.tanh %67 : vector<8x128xf32>
    %69 = arith.subf %36, %68 : vector<8x128xf32>
    %70 = arith.mulf %61, %69 : vector<8x128xf32>
    %71 = arith.addf %68, %70 : vector<8x128xf32>
    %72 = arith.index_cast %c1_i32 : i32 to index
    %c0_18 = arith.constant 0 : index
    %c0_19 = arith.constant 0 : index
    %73 = vector.load %arg6[%72, %c0_18, %c0_19] : memref<8x8x128xf32, #tpu.memory_space<vmem>>, vector<1x8x128xf32>
    %74 = vector.shape_cast %73 : vector<1x8x128xf32> to vector<8x128xf32>
    %75 = vector.shape_cast %71 : vector<8x128xf32> to vector<1x8x128xf32>
    tpu.vector_store %arg6[%72, %c0_18, %c0_19], %75 {strides = array<i32>} : memref<8x8x128xf32, #tpu.memory_space<vmem>>, vector<1x8x128xf32>,
    %c2_i32 = arith.constant 2 : i32
    %76 = arith.index_cast %c2_i32 : i32 to index
    %c0_20 = arith.constant 0 : index
    %c0_21 = arith.constant 0 : index
    %77 = vector.load %arg2[%76, %c0_20, %c0_21] : memref<8x8x384xf32, #tpu.memory_space<vmem>>, vector<1x8x384xf32>
    %78 = vector.shape_cast %77 : vector<1x8x384xf32> to vector<8x384xf32>
    %79 = arith.truncf %71 : vector<8x128xf32> to vector<8x128xbf16>
    %cst_22 = arith.constant dense<0.000000e+00> : vector<8x384xf32>
    %80 = tpu.matmul %79, %3, %cst_22 {dimension_numbers = #tpu.dot_dimension_numbers<[1], [0], [0], [1], [0, 0, 1, 1], [], []>} : vector<8x128xbf16>, vector<128x384xbf16>, vector<8x384xf32> -> vector<8x384xf32>
    %81 = vector.extract_strided_slice %78 {offsets = [0, 0], sizes = [8, 128], strides = [1, 1]} : vector<8x384xf32> to vector<8x128xf32>
    %82 = vector.extract_strided_slice %80 {offsets = [0, 0], sizes = [8, 128], strides = [1, 1]} : vector<8x384xf32> to vector<8x128xf32>
    %83 = arith.addf %81, %82 : vector<8x128xf32>
    %84 = arith.negf %83 : vector<8x128xf32>
    %85 = math.exp %84 : vector<8x128xf32>
    %cst_23 = arith.constant 1.000000e+00 : f32
    %86 = vector.broadcast %cst_23 : f32 to vector<8x128xf32>
    %87 = arith.addf %86, %85 : vector<8x128xf32>
    %88 = arith.divf %86, %87 : vector<8x128xf32>
    %89 = vector.extract_strided_slice %78 {offsets = [0, 128], sizes = [8, 128], strides = [1, 1]} : vector<8x384xf32> to vector<8x128xf32>
    %90 = vector.extract_strided_slice %80 {offsets = [0, 128], sizes = [8, 128], strides = [1, 1]} : vector<8x384xf32> to vector<8x128xf32>
    %91 = arith.addf %89, %90 : vector<8x128xf32>
    %92 = arith.negf %91 : vector<8x128xf32>
    %93 = math.exp %92 : vector<8x128xf32>
    %cst_24 = arith.constant 1.000000e+00 : f32
    %94 = vector.broadcast %cst_24 : f32 to vector<8x128xf32>
    %95 = arith.addf %94, %93 : vector<8x128xf32>
    %96 = arith.divf %94, %95 : vector<8x128xf32>
    %97 = vector.extract_strided_slice %78 {offsets = [0, 256], sizes = [8, 128], strides = [1, 1]} : vector<8x384xf32> to vector<8x128xf32>
    %98 = vector.extract_strided_slice %80 {offsets = [0, 256], sizes = [8, 128], strides = [1, 1]} : vector<8x384xf32> to vector<8x128xf32>
    %99 = vector.broadcast %4 : vector<1x128xf32> to vector<8x128xf32>
    %100 = arith.addf %98, %99 : vector<8x128xf32>
    %101 = arith.mulf %88, %100 : vector<8x128xf32>
    %102 = arith.addf %97, %101 : vector<8x128xf32>
    %103 = math.tanh %102 : vector<8x128xf32>
    %104 = arith.subf %71, %103 : vector<8x128xf32>
    %105 = arith.mulf %96, %104 : vector<8x128xf32>
    %106 = arith.addf %103, %105 : vector<8x128xf32>
    %107 = arith.index_cast %c2_i32 : i32 to index
    %c0_25 = arith.constant 0 : index
    %c0_26 = arith.constant 0 : index
    %108 = vector.load %arg6[%107, %c0_25, %c0_26] : memref<8x8x128xf32, #tpu.memory_space<vmem>>, vector<1x8x128xf32>
    %109 = vector.shape_cast %108 : vector<1x8x128xf32> to vector<8x128xf32>
    %110 = vector.shape_cast %106 : vector<8x128xf32> to vector<1x8x128xf32>
    tpu.vector_store %arg6[%107, %c0_25, %c0_26], %110 {strides = array<i32>} : memref<8x8x128xf32, #tpu.memory_space<vmem>>, vector<1x8x128xf32>,
    %c3_i32 = arith.constant 3 : i32
    %111 = arith.index_cast %c3_i32 : i32 to index
    %c0_27 = arith.constant 0 : index
    %c0_28 = arith.constant 0 : index
    %112 = vector.load %arg2[%111, %c0_27, %c0_28] : memref<8x8x384xf32, #tpu.memory_space<vmem>>, vector<1x8x384xf32>
    %113 = vector.shape_cast %112 : vector<1x8x384xf32> to vector<8x384xf32>
    %114 = arith.truncf %106 : vector<8x128xf32> to vector<8x128xbf16>
    %cst_29 = arith.constant dense<0.000000e+00> : vector<8x384xf32>
    %115 = tpu.matmul %114, %3, %cst_29 {dimension_numbers = #tpu.dot_dimension_numbers<[1], [0], [0], [1], [0, 0, 1, 1], [], []>} : vector<8x128xbf16>, vector<128x384xbf16>, vector<8x384xf32> -> vector<8x384xf32>
    %116 = vector.extract_strided_slice %113 {offsets = [0, 0], sizes = [8, 128], strides = [1, 1]} : vector<8x384xf32> to vector<8x128xf32>
    %117 = vector.extract_strided_slice %115 {offsets = [0, 0], sizes = [8, 128], strides = [1, 1]} : vector<8x384xf32> to vector<8x128xf32>
    %118 = arith.addf %116, %117 : vector<8x128xf32>
    %119 = arith.negf %118 : vector<8x128xf32>
    %120 = math.exp %119 : vector<8x128xf32>
    %cst_30 = arith.constant 1.000000e+00 : f32
    %121 = vector.broadcast %cst_30 : f32 to vector<8x128xf32>
    %122 = arith.addf %121, %120 : vector<8x128xf32>
    %123 = arith.divf %121, %122 : vector<8x128xf32>
    %124 = vector.extract_strided_slice %113 {offsets = [0, 128], sizes = [8, 128], strides = [1, 1]} : vector<8x384xf32> to vector<8x128xf32>
    %125 = vector.extract_strided_slice %115 {offsets = [0, 128], sizes = [8, 128], strides = [1, 1]} : vector<8x384xf32> to vector<8x128xf32>
    %126 = arith.addf %124, %125 : vector<8x128xf32>
    %127 = arith.negf %126 : vector<8x128xf32>
    %128 = math.exp %127 : vector<8x128xf32>
    %cst_31 = arith.constant 1.000000e+00 : f32
    %129 = vector.broadcast %cst_31 : f32 to vector<8x128xf32>
    %130 = arith.addf %129, %128 : vector<8x128xf32>
    %131 = arith.divf %129, %130 : vector<8x128xf32>
    %132 = vector.extract_strided_slice %113 {offsets = [0, 256], sizes = [8, 128], strides = [1, 1]} : vector<8x384xf32> to vector<8x128xf32>
    %133 = vector.extract_strided_slice %115 {offsets = [0, 256], sizes = [8, 128], strides = [1, 1]} : vector<8x384xf32> to vector<8x128xf32>
    %134 = vector.broadcast %4 : vector<1x128xf32> to vector<8x128xf32>
    %135 = arith.addf %133, %134 : vector<8x128xf32>
    %136 = arith.mulf %123, %135 : vector<8x128xf32>
    %137 = arith.addf %132, %136 : vector<8x128xf32>
    %138 = math.tanh %137 : vector<8x128xf32>
    %139 = arith.subf %106, %138 : vector<8x128xf32>
    %140 = arith.mulf %131, %139 : vector<8x128xf32>
    %141 = arith.addf %138, %140 : vector<8x128xf32>
    %142 = arith.index_cast %c3_i32 : i32 to index
    %c0_32 = arith.constant 0 : index
    %c0_33 = arith.constant 0 : index
    %143 = vector.load %arg6[%142, %c0_32, %c0_33] : memref<8x8x128xf32, #tpu.memory_space<vmem>>, vector<1x8x128xf32>
    %144 = vector.shape_cast %143 : vector<1x8x128xf32> to vector<8x128xf32>
    %145 = vector.shape_cast %141 : vector<8x128xf32> to vector<1x8x128xf32>
    tpu.vector_store %arg6[%142, %c0_32, %c0_33], %145 {strides = array<i32>} : memref<8x8x128xf32, #tpu.memory_space<vmem>>, vector<1x8x128xf32>,
    %c4_i32 = arith.constant 4 : i32
    %146 = arith.index_cast %c4_i32 : i32 to index
    %c0_34 = arith.constant 0 : index
    %c0_35 = arith.constant 0 : index
    %147 = vector.load %arg2[%146, %c0_34, %c0_35] : memref<8x8x384xf32, #tpu.memory_space<vmem>>, vector<1x8x384xf32>
    %148 = vector.shape_cast %147 : vector<1x8x384xf32> to vector<8x384xf32>
    %149 = arith.truncf %141 : vector<8x128xf32> to vector<8x128xbf16>
    %cst_36 = arith.constant dense<0.000000e+00> : vector<8x384xf32>
    %150 = tpu.matmul %149, %3, %cst_36 {dimension_numbers = #tpu.dot_dimension_numbers<[1], [0], [0], [1], [0, 0, 1, 1], [], []>} : vector<8x128xbf16>, vector<128x384xbf16>, vector<8x384xf32> -> vector<8x384xf32>
    %151 = vector.extract_strided_slice %148 {offsets = [0, 0], sizes = [8, 128], strides = [1, 1]} : vector<8x384xf32> to vector<8x128xf32>
    %152 = vector.extract_strided_slice %150 {offsets = [0, 0], sizes = [8, 128], strides = [1, 1]} : vector<8x384xf32> to vector<8x128xf32>
    %153 = arith.addf %151, %152 : vector<8x128xf32>
    %154 = arith.negf %153 : vector<8x128xf32>
    %155 = math.exp %154 : vector<8x128xf32>
    %cst_37 = arith.constant 1.000000e+00 : f32
    %156 = vector.broadcast %cst_37 : f32 to vector<8x128xf32>
    %157 = arith.addf %156, %155 : vector<8x128xf32>
    %158 = arith.divf %156, %157 : vector<8x128xf32>
    %159 = vector.extract_strided_slice %148 {offsets = [0, 128], sizes = [8, 128], strides = [1, 1]} : vector<8x384xf32> to vector<8x128xf32>
    %160 = vector.extract_strided_slice %150 {offsets = [0, 128], sizes = [8, 128], strides = [1, 1]} : vector<8x384xf32> to vector<8x128xf32>
    %161 = arith.addf %159, %160 : vector<8x128xf32>
    %162 = arith.negf %161 : vector<8x128xf32>
    %163 = math.exp %162 : vector<8x128xf32>
    %cst_38 = arith.constant 1.000000e+00 : f32
    %164 = vector.broadcast %cst_38 : f32 to vector<8x128xf32>
    %165 = arith.addf %164, %163 : vector<8x128xf32>
    %166 = arith.divf %164, %165 : vector<8x128xf32>
    %167 = vector.extract_strided_slice %148 {offsets = [0, 256], sizes = [8, 128], strides = [1, 1]} : vector<8x384xf32> to vector<8x128xf32>
    %168 = vector.extract_strided_slice %150 {offsets = [0, 256], sizes = [8, 128], strides = [1, 1]} : vector<8x384xf32> to vector<8x128xf32>
    %169 = vector.broadcast %4 : vector<1x128xf32> to vector<8x128xf32>
    %170 = arith.addf %168, %169 : vector<8x128xf32>
    %171 = arith.mulf %158, %170 : vector<8x128xf32>
    %172 = arith.addf %167, %171 : vector<8x128xf32>
    %173 = math.tanh %172 : vector<8x128xf32>
    %174 = arith.subf %141, %173 : vector<8x128xf32>
    %175 = arith.mulf %166, %174 : vector<8x128xf32>
    %176 = arith.addf %173, %175 : vector<8x128xf32>
    %177 = arith.index_cast %c4_i32 : i32 to index
    %c0_39 = arith.constant 0 : index
    %c0_40 = arith.constant 0 : index
    %178 = vector.load %arg6[%177, %c0_39, %c0_40] : memref<8x8x128xf32, #tpu.memory_space<vmem>>, vector<1x8x128xf32>
    %179 = vector.shape_cast %178 : vector<1x8x128xf32> to vector<8x128xf32>
    %180 = vector.shape_cast %176 : vector<8x128xf32> to vector<1x8x128xf32>
    tpu.vector_store %arg6[%177, %c0_39, %c0_40], %180 {strides = array<i32>} : memref<8x8x128xf32, #tpu.memory_space<vmem>>, vector<1x8x128xf32>,
    %c5_i32 = arith.constant 5 : i32
    %181 = arith.index_cast %c5_i32 : i32 to index
    %c0_41 = arith.constant 0 : index
    %c0_42 = arith.constant 0 : index
    %182 = vector.load %arg2[%181, %c0_41, %c0_42] : memref<8x8x384xf32, #tpu.memory_space<vmem>>, vector<1x8x384xf32>
    %183 = vector.shape_cast %182 : vector<1x8x384xf32> to vector<8x384xf32>
    %184 = arith.truncf %176 : vector<8x128xf32> to vector<8x128xbf16>
    %cst_43 = arith.constant dense<0.000000e+00> : vector<8x384xf32>
    %185 = tpu.matmul %184, %3, %cst_43 {dimension_numbers = #tpu.dot_dimension_numbers<[1], [0], [0], [1], [0, 0, 1, 1], [], []>} : vector<8x128xbf16>, vector<128x384xbf16>, vector<8x384xf32> -> vector<8x384xf32>
    %186 = vector.extract_strided_slice %183 {offsets = [0, 0], sizes = [8, 128], strides = [1, 1]} : vector<8x384xf32> to vector<8x128xf32>
    %187 = vector.extract_strided_slice %185 {offsets = [0, 0], sizes = [8, 128], strides = [1, 1]} : vector<8x384xf32> to vector<8x128xf32>
    %188 = arith.addf %186, %187 : vector<8x128xf32>
    %189 = arith.negf %188 : vector<8x128xf32>
    %190 = math.exp %189 : vector<8x128xf32>
    %cst_44 = arith.constant 1.000000e+00 : f32
    %191 = vector.broadcast %cst_44 : f32 to vector<8x128xf32>
    %192 = arith.addf %191, %190 : vector<8x128xf32>
    %193 = arith.divf %191, %192 : vector<8x128xf32>
    %194 = vector.extract_strided_slice %183 {offsets = [0, 128], sizes = [8, 128], strides = [1, 1]} : vector<8x384xf32> to vector<8x128xf32>
    %195 = vector.extract_strided_slice %185 {offsets = [0, 128], sizes = [8, 128], strides = [1, 1]} : vector<8x384xf32> to vector<8x128xf32>
    %196 = arith.addf %194, %195 : vector<8x128xf32>
    %197 = arith.negf %196 : vector<8x128xf32>
    %198 = math.exp %197 : vector<8x128xf32>
    %cst_45 = arith.constant 1.000000e+00 : f32
    %199 = vector.broadcast %cst_45 : f32 to vector<8x128xf32>
    %200 = arith.addf %199, %198 : vector<8x128xf32>
    %201 = arith.divf %199, %200 : vector<8x128xf32>
    %202 = vector.extract_strided_slice %183 {offsets = [0, 256], sizes = [8, 128], strides = [1, 1]} : vector<8x384xf32> to vector<8x128xf32>
    %203 = vector.extract_strided_slice %185 {offsets = [0, 256], sizes = [8, 128], strides = [1, 1]} : vector<8x384xf32> to vector<8x128xf32>
    %204 = vector.broadcast %4 : vector<1x128xf32> to vector<8x128xf32>
    %205 = arith.addf %203, %204 : vector<8x128xf32>
    %206 = arith.mulf %193, %205 : vector<8x128xf32>
    %207 = arith.addf %202, %206 : vector<8x128xf32>
    %208 = math.tanh %207 : vector<8x128xf32>
    %209 = arith.subf %176, %208 : vector<8x128xf32>
    %210 = arith.mulf %201, %209 : vector<8x128xf32>
    %211 = arith.addf %208, %210 : vector<8x128xf32>
    %212 = arith.index_cast %c5_i32 : i32 to index
    %c0_46 = arith.constant 0 : index
    %c0_47 = arith.constant 0 : index
    %213 = vector.load %arg6[%212, %c0_46, %c0_47] : memref<8x8x128xf32, #tpu.memory_space<vmem>>, vector<1x8x128xf32>
    %214 = vector.shape_cast %213 : vector<1x8x128xf32> to vector<8x128xf32>
    %215 = vector.shape_cast %211 : vector<8x128xf32> to vector<1x8x128xf32>
    tpu.vector_store %arg6[%212, %c0_46, %c0_47], %215 {strides = array<i32>} : memref<8x8x128xf32, #tpu.memory_space<vmem>>, vector<1x8x128xf32>,
    %c6_i32 = arith.constant 6 : i32
    %216 = arith.index_cast %c6_i32 : i32 to index
    %c0_48 = arith.constant 0 : index
    %c0_49 = arith.constant 0 : index
    %217 = vector.load %arg2[%216, %c0_48, %c0_49] : memref<8x8x384xf32, #tpu.memory_space<vmem>>, vector<1x8x384xf32>
    %218 = vector.shape_cast %217 : vector<1x8x384xf32> to vector<8x384xf32>
    %219 = arith.truncf %211 : vector<8x128xf32> to vector<8x128xbf16>
    %cst_50 = arith.constant dense<0.000000e+00> : vector<8x384xf32>
    %220 = tpu.matmul %219, %3, %cst_50 {dimension_numbers = #tpu.dot_dimension_numbers<[1], [0], [0], [1], [0, 0, 1, 1], [], []>} : vector<8x128xbf16>, vector<128x384xbf16>, vector<8x384xf32> -> vector<8x384xf32>
    %221 = vector.extract_strided_slice %218 {offsets = [0, 0], sizes = [8, 128], strides = [1, 1]} : vector<8x384xf32> to vector<8x128xf32>
    %222 = vector.extract_strided_slice %220 {offsets = [0, 0], sizes = [8, 128], strides = [1, 1]} : vector<8x384xf32> to vector<8x128xf32>
    %223 = arith.addf %221, %222 : vector<8x128xf32>
    %224 = arith.negf %223 : vector<8x128xf32>
    %225 = math.exp %224 : vector<8x128xf32>
    %cst_51 = arith.constant 1.000000e+00 : f32
    %226 = vector.broadcast %cst_51 : f32 to vector<8x128xf32>
    %227 = arith.addf %226, %225 : vector<8x128xf32>
    %228 = arith.divf %226, %227 : vector<8x128xf32>
    %229 = vector.extract_strided_slice %218 {offsets = [0, 128], sizes = [8, 128], strides = [1, 1]} : vector<8x384xf32> to vector<8x128xf32>
    %230 = vector.extract_strided_slice %220 {offsets = [0, 128], sizes = [8, 128], strides = [1, 1]} : vector<8x384xf32> to vector<8x128xf32>
    %231 = arith.addf %229, %230 : vector<8x128xf32>
    %232 = arith.negf %231 : vector<8x128xf32>
    %233 = math.exp %232 : vector<8x128xf32>
    %cst_52 = arith.constant 1.000000e+00 : f32
    %234 = vector.broadcast %cst_52 : f32 to vector<8x128xf32>
    %235 = arith.addf %234, %233 : vector<8x128xf32>
    %236 = arith.divf %234, %235 : vector<8x128xf32>
    %237 = vector.extract_strided_slice %218 {offsets = [0, 256], sizes = [8, 128], strides = [1, 1]} : vector<8x384xf32> to vector<8x128xf32>
    %238 = vector.extract_strided_slice %220 {offsets = [0, 256], sizes = [8, 128], strides = [1, 1]} : vector<8x384xf32> to vector<8x128xf32>
    %239 = vector.broadcast %4 : vector<1x128xf32> to vector<8x128xf32>
    %240 = arith.addf %238, %239 : vector<8x128xf32>
    %241 = arith.mulf %228, %240 : vector<8x128xf32>
    %242 = arith.addf %237, %241 : vector<8x128xf32>
    %243 = math.tanh %242 : vector<8x128xf32>
    %244 = arith.subf %211, %243 : vector<8x128xf32>
    %245 = arith.mulf %236, %244 : vector<8x128xf32>
    %246 = arith.addf %243, %245 : vector<8x128xf32>
    %247 = arith.index_cast %c6_i32 : i32 to index
    %c0_53 = arith.constant 0 : index
    %c0_54 = arith.constant 0 : index
    %248 = vector.load %arg6[%247, %c0_53, %c0_54] : memref<8x8x128xf32, #tpu.memory_space<vmem>>, vector<1x8x128xf32>
    %249 = vector.shape_cast %248 : vector<1x8x128xf32> to vector<8x128xf32>
    %250 = vector.shape_cast %246 : vector<8x128xf32> to vector<1x8x128xf32>
    tpu.vector_store %arg6[%247, %c0_53, %c0_54], %250 {strides = array<i32>} : memref<8x8x128xf32, #tpu.memory_space<vmem>>, vector<1x8x128xf32>,
    %c7_i32 = arith.constant 7 : i32
    %251 = arith.index_cast %c7_i32 : i32 to index
    %c0_55 = arith.constant 0 : index
    %c0_56 = arith.constant 0 : index
    %252 = vector.load %arg2[%251, %c0_55, %c0_56] : memref<8x8x384xf32, #tpu.memory_space<vmem>>, vector<1x8x384xf32>
    %253 = vector.shape_cast %252 : vector<1x8x384xf32> to vector<8x384xf32>
    %254 = arith.truncf %246 : vector<8x128xf32> to vector<8x128xbf16>
    %cst_57 = arith.constant dense<0.000000e+00> : vector<8x384xf32>
    %255 = tpu.matmul %254, %3, %cst_57 {dimension_numbers = #tpu.dot_dimension_numbers<[1], [0], [0], [1], [0, 0, 1, 1], [], []>} : vector<8x128xbf16>, vector<128x384xbf16>, vector<8x384xf32> -> vector<8x384xf32>
    %256 = vector.extract_strided_slice %253 {offsets = [0, 0], sizes = [8, 128], strides = [1, 1]} : vector<8x384xf32> to vector<8x128xf32>
    %257 = vector.extract_strided_slice %255 {offsets = [0, 0], sizes = [8, 128], strides = [1, 1]} : vector<8x384xf32> to vector<8x128xf32>
    %258 = arith.addf %256, %257 : vector<8x128xf32>
    %259 = arith.negf %258 : vector<8x128xf32>
    %260 = math.exp %259 : vector<8x128xf32>
    %cst_58 = arith.constant 1.000000e+00 : f32
    %261 = vector.broadcast %cst_58 : f32 to vector<8x128xf32>
    %262 = arith.addf %261, %260 : vector<8x128xf32>
    %263 = arith.divf %261, %262 : vector<8x128xf32>
    %264 = vector.extract_strided_slice %253 {offsets = [0, 128], sizes = [8, 128], strides = [1, 1]} : vector<8x384xf32> to vector<8x128xf32>
    %265 = vector.extract_strided_slice %255 {offsets = [0, 128], sizes = [8, 128], strides = [1, 1]} : vector<8x384xf32> to vector<8x128xf32>
    %266 = arith.addf %264, %265 : vector<8x128xf32>
    %267 = arith.negf %266 : vector<8x128xf32>
    %268 = math.exp %267 : vector<8x128xf32>
    %cst_59 = arith.constant 1.000000e+00 : f32
    %269 = vector.broadcast %cst_59 : f32 to vector<8x128xf32>
    %270 = arith.addf %269, %268 : vector<8x128xf32>
    %271 = arith.divf %269, %270 : vector<8x128xf32>
    %272 = vector.extract_strided_slice %253 {offsets = [0, 256], sizes = [8, 128], strides = [1, 1]} : vector<8x384xf32> to vector<8x128xf32>
    %273 = vector.extract_strided_slice %255 {offsets = [0, 256], sizes = [8, 128], strides = [1, 1]} : vector<8x384xf32> to vector<8x128xf32>
    %274 = vector.broadcast %4 : vector<1x128xf32> to vector<8x128xf32>
    %275 = arith.addf %273, %274 : vector<8x128xf32>
    %276 = arith.mulf %263, %275 : vector<8x128xf32>
    %277 = arith.addf %272, %276 : vector<8x128xf32>
    %278 = math.tanh %277 : vector<8x128xf32>
    %279 = arith.subf %246, %278 : vector<8x128xf32>
    %280 = arith.mulf %271, %279 : vector<8x128xf32>
    %281 = arith.addf %278, %280 : vector<8x128xf32>
    %282 = arith.index_cast %c7_i32 : i32 to index
    %c0_60 = arith.constant 0 : index
    %c0_61 = arith.constant 0 : index
    %283 = vector.load %arg6[%282, %c0_60, %c0_61] : memref<8x8x128xf32, #tpu.memory_space<vmem>>, vector<1x8x128xf32>
    %284 = vector.shape_cast %283 : vector<1x8x128xf32> to vector<8x128xf32>
    %285 = vector.shape_cast %281 : vector<8x128xf32> to vector<1x8x128xf32>
    tpu.vector_store %arg6[%282, %c0_60, %c0_61], %285 {strides = array<i32>} : memref<8x8x128xf32, #tpu.memory_space<vmem>>, vector<1x8x128xf32>,
    %c8_i32 = arith.constant 8 : i32
    %c0_62 = arith.constant 0 : index
    %c0_63 = arith.constant 0 : index
    %286 = vector.load %arg8[%c0_62, %c0_63] : memref<8x128xf32, #tpu.memory_space<vmem>>, vector<8x128xf32>
    tpu.vector_store %arg8[%c0_62, %c0_63], %281 {strides = array<i32>} : memref<8x128xf32, #tpu.memory_space<vmem>>, vector<8x128xf32>,
    %c0_i32_64 = arith.constant 0 : i32
    %287 = arith.cmpi eq, %arg1, %c0_i32_64 : i32
    %288 = arith.extui %287 : i1 to i32
    %c0_i32_65 = arith.constant 0 : i32
    %289 = arith.cmpi ne, %288, %c0_i32_65 : i32
    scf.if %289 {
      %c0_66 = arith.constant 0 : index
      %c0_67 = arith.constant 0 : index
      %290 = vector.load %arg7[%c0_66, %c0_67] : memref<8x128xf32, #tpu.memory_space<vmem>>, vector<8x128xf32>
      tpu.vector_store %arg7[%c0_66, %c0_67], %281 {strides = array<i32>} : memref<8x128xf32, #tpu.memory_space<vmem>>, vector<8x128xf32>,
    } else {
    }
    return
  }
  func.func @transform_0(%arg0: i32, %arg1: i32) -> (i32, i32, i32) {
    %c0_i32 = arith.constant 0 : i32
    %c0_i32_0 = arith.constant 0 : i32
    return %arg1, %arg0, %c0_i32 : i32, i32, i32
  }
  func.func @transform_1(%arg0: i32, %arg1: i32) -> (i32, i32) {
    %c0_i32 = arith.constant 0 : i32
    %c0_i32_0 = arith.constant 0 : i32
    %c0_i32_1 = arith.constant 0 : i32
    return %c0_i32, %c0_i32_0 : i32, i32
  }
  func.func @transform_2(%arg0: i32, %arg1: i32) -> (i32, i32) {
    %c0_i32 = arith.constant 0 : i32
    %c0_i32_0 = arith.constant 0 : i32
    %c0_i32_1 = arith.constant 0 : i32
    return %c0_i32, %c0_i32_0 : i32, i32
  }
  func.func @transform_3(%arg0: i32, %arg1: i32) -> (i32, i32) {
    %c0_i32 = arith.constant 0 : i32
    %c0_i32_0 = arith.constant 0 : i32
    return %arg0, %c0_i32 : i32, i32
  }
  func.func @transform_4(%arg0: i32, %arg1: i32) -> (i32, i32, i32) {
    %c0_i32 = arith.constant 0 : i32
    %c0_i32_0 = arith.constant 0 : i32
    return %arg1, %arg0, %c0_i32 : i32, i32, i32
  }
  func.func @transform_5(%arg0: i32, %arg1: i32) -> (i32, i32) {
    %c0_i32 = arith.constant 0 : i32
    %c0_i32_0 = arith.constant 0 : i32
    return %arg0, %c0_i32 : i32, i32
  }
}

</mosaic_0001>

<llo_original>
// kernel: tpu_custom_call.1
$region0: #{tpu_custom_call.1}
  #allocation0 [shape = 'u32[]', space=smem, size = 0x4, offset = 0x4, fixed_abs, tag = 'smem constant byte address 0x4 - core index']
  #allocation1 [shape = 'u32[144,128]{1,0:T(1,128)}', space=vmem, size = 0x12000, scoped, tag = 'internal scratch']
  #allocation2 [shape = 'f32[8,128]{1,0:T(8,128)}', space=vmem, size = 0x1000, scoped, tag = 'scratch operand']
  %s0 = inlined_call_operand.hbm [shape: f32[8,8,384], index: 0, kind: input, shape index: {}]
  %s1 = inlined_call_operand.hbm [shape: bf16[128,384], index: 1, kind: input, shape index: {}]
  %s2 = inlined_call_operand.vmem [shape: f32[1,128], index: 2, kind: input, shape index: {}]
  %s3 = inlined_call_operand.vmem [shape: f32[8,128], index: 3, kind: input, shape index: {}]
  %s4 = inlined_call_operand.hbm [shape: f32[8,8,128], index: 4, kind: output, shape index: {0}]
  %s5 = inlined_call_operand.hbm [shape: f32[8,128], index: 5, kind: output, shape index: {1}]
  %6 = xla_tuple %s4, %s5
  %s7 = sld [smem:[#allocation0]]
  $region50: #{tpu_custom_call.1} parent=0
    _
  %s9 = ssub.s32 1, %s7
  %s10 = scalar_select 0, %s9, %s7
  $region1: #{tpu_custom_call.1} parent=0
    #allocation3 [shape = 'u8[98304]{0}', space=vmem, size = 0x18000, scoped, tag = 'input window, operand 0, single buffered']
    #allocation4 [shape = 's32[1]{0}', space=sflag, size = 0x4, scoped, tag = 'scoped memory for tpu_custom_call.1']
    #allocation5 [shape = 's32[1]{0}', space=sflag, size = 0x4, scoped, tag = 'scoped memory for tpu_custom_call.1']
    #allocation6 [shape = 'u8[98304]{0}', space=vmem, size = 0x18000, scoped, tag = 'input window, operand 1, single buffered']
    #allocation7 [shape = 's32[1]{0}', space=sflag, size = 0x4, scoped, tag = 'scoped memory for tpu_custom_call.1']
    #allocation8 [shape = 'u8[32768]{0}', space=vmem, size = 0x8000, scoped, tag = 'output window, operand 0, single buffered']
    #allocation9 [shape = 'u8[4096]{0}', space=vmem, size = 0x1000, scoped, tag = 'output window, operand 1, single buffered']
    #allocation10 [shape = 's32[1]{0}', space=sflag, size = 0x4, scoped, tag = 'scoped memory for tpu_custom_call.1']
    %11 = vsyncpa [#allocation4], 0
    %12 = vsyncpa [#allocation7], 0
    %13 = vsyncpa [#allocation5], 0
    %14 = vsyncpa [#allocation10], 0
    // Predicated region
    $region2: #{tpu_custom_call.1} parent=1 // pred_check
      _
    $region3: #{tpu_custom_call.1} parent=1 // pred_check_branch
      %16 = sbr.rel (0) target = $region5
    $region4: #{tpu_custom_call.1} parent=1 // pred_region
      %s18 = ssub.s32 3072, 3072
      %19 = vsyncadd [#allocation4], %s18
      %s20 = sshll.u32 [#allocation3], 4
      %s21 = int_to_ptr.vmem [resolvable:$true] %s20
      %26 = dma.hbm_to_vmem [thread:$0]  %s0, 3072, %s21, [#allocation4], 384, 384, 24
    $region5: #{tpu_custom_call.1} parent=1 // pred_fallthru
      _
    // Predicated region
    $region6: #{tpu_custom_call.1} parent=1 // pred_check
      _
    $region7: #{tpu_custom_call.1} parent=1 // pred_check_branch
      %28 = sbr.rel (0) target = $region9
    $region8: #{tpu_custom_call.1} parent=1 // pred_region
      %s30 = ssub.s32 3072, 3072
      %31 = vsyncadd [#allocation7], %s30
      %s32 = sshll.u32 [#allocation6], 4
      %s33 = int_to_ptr.vmem [resolvable:$true] %s32
      %38 = dma.hbm_to_vmem [thread:$0]  %s1, 3072, %s33, [#allocation7], 192, 192, 12
    $region9: #{tpu_custom_call.1} parent=1 // pred_fallthru
      _
    // Predicated region
    $region10: #{tpu_custom_call.1} parent=1 // pred_check
      _
    $region11: #{tpu_custom_call.1} parent=1 // pred_check_branch
      %40 = sbr.rel (0) target = $region13
    $region12: #{tpu_custom_call.1} parent=1 // pred_region
      _
    $region13: #{tpu_custom_call.1} parent=1 // pred_fallthru
      _
    // Predicated region
    $region14: #{tpu_custom_call.1} parent=1 // pred_check
      _
    $region15: #{tpu_custom_call.1} parent=1 // pred_check_branch
      %42 = sbr.rel (0) target = $region17
    $region16: #{tpu_custom_call.1} parent=1 // pred_region
      _
    $region17: #{tpu_custom_call.1} parent=1 // pred_fallthru
      _
    // Predicated region
    $region18: #{tpu_custom_call.1} parent=1 // pred_check
      _
    $region19: #{tpu_custom_call.1} parent=1 // pred_check_branch
      %44 = sbr.rel (0) target = $region21
    $region20: #{tpu_custom_call.1} parent=1 // pred_region
      %45 = dma.done [#allocation4], 3072
    $region21: #{tpu_custom_call.1} parent=1 // pred_fallthru
      _
    // Predicated region
    $region22: #{tpu_custom_call.1} parent=1 // pred_check
      _
    $region23: #{tpu_custom_call.1} parent=1 // pred_check_branch
      %47 = sbr.rel (0) target = $region25
    $region24: #{tpu_custom_call.1} parent=1 // pred_region
      %48 = dma.done [#allocation7], 3072
    $region25: #{tpu_custom_call.1} parent=1 // pred_fallthru
      _
    %p50 = scmp.eq.s32.totalorder 0, 0
    // Predicated region
    $region26: #{tpu_custom_call.1} parent=1 // pred_check
      %p51 = pneg %p50
    $region27: #{tpu_custom_call.1} parent=1 // pred_check_branch
      %53 = sbr.rel (%p51) target = $region29
    $region28: #{tpu_custom_call.1} parent=1 // pred_region
      %v54 = vld [vmem:[%s3] sm:$0xff]
      %55 = vst [vmem:[#allocation2] sm:$0xff] %v54
    $region29: #{tpu_custom_call.1} parent=1 // pred_fallthru
      _
    %v56 = vld [vmem:[#allocation6] sm:$0xff]
    %v57 = vld [vmem:[#allocation6 + $0x8] sm:$0xf]
    %v58 = vld [vmem:[#allocation6 + $0xc] sm:$0xff]
    %v59 = vld [vmem:[#allocation6 + $0x14] sm:$0xf]
    %v60 = vld [vmem:[#allocation6 + $0x18] sm:$0xff]
    %v61 = vld [vmem:[#allocation6 + $0x20] sm:$0xf]
    %v62 = vld [vmem:[#allocation6 + $0x24] sm:$0xff]
    %v63 = vld [vmem:[#allocation6 + $0x2c] sm:$0xf]
    %v64 = vld [vmem:[#allocation6 + $0x30] sm:$0xff]
    %v65 = vld [vmem:[#allocation6 + $0x38] sm:$0xf]
    %v66 = vld [vmem:[#allocation6 + $0x3c] sm:$0xff]
    %v67 = vld [vmem:[#allocation6 + $0x44] sm:$0xf]
    %v68 = vld [vmem:[#allocation6 + $0x48] sm:$0xff]
    %v69 = vld [vmem:[#allocation6 + $0x50] sm:$0xf]
    %v70 = vld [vmem:[#allocation6 + $0x54] sm:$0xff]
    %v71 = vld [vmem:[#allocation6 + $0x5c] sm:$0xf]
    %v72 = vld [vmem:[#allocation6 + $0x60] sm:$0xff]
    %v73 = vld [vmem:[#allocation6 + $0x68] sm:$0xf]
    %v74 = vld [vmem:[#allocation6 + $0x6c] sm:$0xff]
    %v75 = vld [vmem:[#allocation6 + $0x74] sm:$0xf]
    %v76 = vld [vmem:[#allocation6 + $0x78] sm:$0xff]
    %v77 = vld [vmem:[#allocation6 + $0x80] sm:$0xf]
    %v78 = vld [vmem:[#allocation6 + $0x84] sm:$0xff]
    %v79 = vld [vmem:[#allocation6 + $0x8c] sm:$0xf]
    %v80 = vld [vmem:[#allocation6 + $0x90] sm:$0xff]
    %v81 = vld [vmem:[#allocation6 + $0x98] sm:$0xf]
    %v82 = vld [vmem:[#allocation6 + $0x9c] sm:$0xff]
    %v83 = vld [vmem:[#allocation6 + $0xa4] sm:$0xf]
    %v84 = vld [vmem:[#allocation6 + $0xa8] sm:$0xff]
    %v85 = vld [vmem:[#allocation6 + $0xb0] sm:$0xf]
    %v86 = vld [vmem:[#allocation6 + $0xb4] sm:$0xff]
    %v87 = vld [vmem:[#allocation6 + $0xbc] sm:$0xf]
    %v88 = vld [vmem:[%s2] sm:$0x1]
    %v89 = vld [vmem:[#allocation2] sm:$0xff]
    %v90 = vld [vmem:[#allocation3] sm:$0xff]
    %v91 = vld [vmem:[#allocation3 + $0x8] sm:$0xff]
    %v92 = vld [vmem:[#allocation3 + $0x10] sm:$0xff]
    %v93 = vpack.c.bf16 %v89, %v89
    %v126 = vunpack.c.l.b16 %v56
    %v127 = vunpack.c.h.b16 %v56
    %v128 = vunpack.c.l.b16 %v57
    %v129 = vunpack.c.l.b16 %v58
    %v130 = vunpack.c.h.b16 %v58
    %v131 = vunpack.c.l.b16 %v59
    %v132 = vunpack.c.l.b16 %v60
    %v133 = vunpack.c.h.b16 %v60
    %v134 = vunpack.c.l.b16 %v61
    %v135 = vunpack.c.l.b16 %v62
    %v136 = vunpack.c.h.b16 %v62
    %v137 = vunpack.c.l.b16 %v63
    %v138 = vunpack.c.l.b16 %v64
    %v139 = vunpack.c.h.b16 %v64
    %v140 = vunpack.c.l.b16 %v65
    %v141 = vunpack.c.l.b16 %v66
    %v142 = vunpack.c.h.b16 %v66
    %v143 = vunpack.c.l.b16 %v67
    %v144 = vunpack.c.l.b16 %v68
    %v145 = vunpack.c.h.b16 %v68
    %v146 = vunpack.c.l.b16 %v69
    %v147 = vunpack.c.l.b16 %v70
    %v148 = vunpack.c.h.b16 %v70
    %v149 = vunpack.c.l.b16 %v71
    %v150 = vunpack.c.l.b16 %v72
    %v151 = vunpack.c.h.b16 %v72
    %v152 = vunpack.c.l.b16 %v73
    %v153 = vunpack.c.l.b16 %v74
    %v154 = vunpack.c.h.b16 %v74
    %v155 = vunpack.c.l.b16 %v75
    %v156 = vunpack.c.l.b16 %v76
    %v157 = vunpack.c.h.b16 %v76
    %v158 = vunpack.c.l.b16 %v77
    %v159 = vunpack.c.l.b16 %v78
    %v160 = vunpack.c.h.b16 %v78
    %v161 = vunpack.c.l.b16 %v79
    %v162 = vunpack.c.l.b16 %v80
    %v163 = vunpack.c.h.b16 %v80
    %v164 = vunpack.c.l.b16 %v81
    %v165 = vunpack.c.l.b16 %v82
    %v166 = vunpack.c.h.b16 %v82
    %v167 = vunpack.c.l.b16 %v83
    %v168 = vunpack.c.l.b16 %v84
    %v169 = vunpack.c.h.b16 %v84
    %v170 = vunpack.c.l.b16 %v85
    %v171 = vunpack.c.l.b16 %v86
    %v172 = vunpack.c.h.b16 %v86
    %v173 = vunpack.c.l.b16 %v87
    %v174 = vpack.c.b16 %v129, %v126
    %v175 = vpack.c.b16 %v130, %v127
    %v176 = vpack.c.b16 %v131, %v128
    %v177 = vpack.c.b16 %v135, %v132
    %v178 = vpack.c.b16 %v136, %v133
    %v179 = vpack.c.b16 %v137, %v134
    %v180 = vpack.c.b16 %v141, %v138
    %v181 = vpack.c.b16 %v142, %v139
    %v182 = vpack.c.b16 %v143, %v140
    %v183 = vpack.c.b16 %v147, %v144
    %v184 = vpack.c.b16 %v148, %v145
    %v185 = vpack.c.b16 %v149, %v146
    %v186 = vpack.c.b16 %v153, %v150
    %v187 = vpack.c.b16 %v154, %v151
    %v188 = vpack.c.b16 %v155, %v152
    %v189 = vpack.c.b16 %v159, %v156
    %v190 = vpack.c.b16 %v160, %v157
    %v191 = vpack.c.b16 %v161, %v158
    %v192 = vpack.c.b16 %v165, %v162
    %v193 = vpack.c.b16 %v166, %v163
    %v194 = vpack.c.b16 %v167, %v164
    %v195 = vpack.c.b16 %v171, %v168
    %v196 = vpack.c.b16 %v172, %v169
    %v197 = vpack.c.b16 %v173, %v170
    %222 = vmatprep.subr.bf16.mxu0 %v175
    %223 = vmatpush1.bf16.msra.mxu0 %v174
    %224 = vmatprep.subr.bf16.mxu0 %v178
    %225 = vmatpush1.bf16.msra.mxu0 %v177
    %226 = vmatprep.subr.bf16.mxu0 %v181
    %227 = vmatpush1.bf16.msra.mxu0 %v180
    %228 = vmatprep.subr.bf16.mxu0 %v184
    %229 = vmatpush1.bf16.msra.mxu0 %v183
    %230 = vmatprep.subr.bf16.mxu0 %v187
    %231 = vmatpush1.bf16.msra.mxu0 %v186
    %232 = vmatprep.subr.bf16.mxu0 %v190
    %233 = vmatpush1.bf16.msra.mxu0 %v189
    %234 = vmatprep.subr.bf16.mxu0 %v193
    %235 = vmatpush1.bf16.msra.mxu0 %v192
    %236 = vmatprep.subr.bf16.mxu0 %v196
    %237 = vmatpush1.bf16.msra.mxu0 %v195
    %238 = vmatprep.subr.bf16.mxu0 0
    %239 = vmatpush1.bf16.msra.mxu0 0
    %240 = vmatprep.subr.bf16.mxu0 0
    %241 = vmatpush1.bf16.msra.mxu0 0
    %242 = vmatprep.subr.bf16.mxu0 0
    %243 = vmatpush1.bf16.msra.mxu0 0
    %244 = vmatprep.subr.bf16.mxu0 0
    %245 = vmatpush1.bf16.msra.mxu0 0
    %246 = vmatprep.subr.bf16.mxu0 0
    %247 = vmatpush1.bf16.msra.mxu0 0
    %248 = vmatprep.subr.bf16.mxu0 0
    %249 = vmatpush1.bf16.msra.mxu0 0
    %250 = vmatprep.subr.bf16.mxu0 0
    %251 = vmatpush1.bf16.msra.mxu0 0
    %252 = vmatprep.subr.bf16.mxu0 0
    %253 = vmatpush1.bf16.msra.mxu0 0
    %254 = vmatprep.mubr.bf16.mxu0 0
    %255 = vmatmul.mubr.bf16.gmra.mrb[0].mxu0 %v93
    %v256 = vpop.f32.mrb[0].mxu0
    %v257 = vadd.f32 0.0, %v256
    %v258 = vpop.f32.mrb[0].mxu0
    %v259 = vadd.f32 0.0, %v258
    %v260 = vpop.f32.mrb[0].mxu0
    %v261 = vpop.f32.mrb[0].mxu0
    %262 = vdwg.mxu0
    %263 = vmatprep.subr.bf16.mxu0 0
    %264 = vmatpush1.bf16.msra.mxu0 %v176
    %265 = vmatprep.subr.bf16.mxu0 0
    %266 = vmatpush1.bf16.msra.mxu0 %v179
    %267 = vmatprep.subr.bf16.mxu0 0
    %268 = vmatpush1.bf16.msra.mxu0 %v182
    %269 = vmatprep.subr.bf16.mxu0 0
    %270 = vmatpush1.bf16.msra.mxu0 %v185
    %271 = vmatprep.subr.bf16.mxu0 0
    %272 = vmatpush1.bf16.msra.mxu0 %v188
    %273 = vmatprep.subr.bf16.mxu0 0
    %274 = vmatpush1.bf16.msra.mxu0 %v191
    %275 = vmatprep.subr.bf16.mxu0 0
    %276 = vmatpush1.bf16.msra.mxu0 %v194
    %277 = vmatprep.subr.bf16.mxu0 0
    %278 = vmatpush1.bf16.msra.mxu0 %v197
    %279 = vmatprep.subr.bf16.mxu0 0
    %280 = vmatpush1.bf16.msra.mxu0 0
    %281 = vmatprep.subr.bf16.mxu0 0
    %282 = vmatpush1.bf16.msra.mxu0 0
    %283 = vmatprep.subr.bf16.mxu0 0
    %284 = vmatpush1.bf16.msra.mxu0 0
    %285 = vmatprep.subr.bf16.mxu0 0
    %286 = vmatpush1.bf16.msra.mxu0 0
    %287 = vmatprep.subr.bf16.mxu0 0
    %288 = vmatpush1.bf16.msra.mxu0 0
    %289 = vmatprep.subr.bf16.mxu0 0
    %290 = vmatpush1.bf16.msra.mxu0 0
    %291 = vmatprep.subr.bf16.mxu0 0
    %292 = vmatpush1.bf16.msra.mxu0 0
    %293 = vmatprep.subr.bf16.mxu0 0
    %294 = vmatpush1.bf16.msra.mxu0 0
    %295 = vmatprep.mubr.bf16.mxu0 0
    %296 = vmatmul.mubr.bf16.gmra.mrb[0].mxu0 %v93
    %v297 = vpop.f32.mrb[0].mxu0
    %v298 = vadd.f32 0.0, %v297
    %v299 = vpop.f32.mrb[0].mxu0
    %v300 = vpop.f32.mrb[0].mxu0
    %v301 = vpop.f32.mrb[0].mxu0
    %302 = vdwg.mxu0
    %v303 = vadd.f32 %v90, %v257
    %v304 = vxor.u32 %v303, 2147483648
    %v305 = vmul.f32 %v304, 1.442695
    %v306 = vpow.pop %v305
    %v307 = vadd.f32 %v306, 1.0
    %v308 = vrcp.pop %v307
    %v309 = vmul.f32 1.0, %v308
    %v310 = vadd.f32 %v91, %v259
    %v311 = vxor.u32 %v310, 2147483648
    %v312 = vmul.f32 %v311, 1.442695
    %v313 = vpow.pop %v312
    %v314 = vadd.f32 %v313, 1.0
    %v315 = vrcp.pop %v314
    %v316 = vmul.f32 1.0, %v315
    %v318 = vlaneseq
    %v319 = vshrl.u32 %v318, 7
    %v320 = vsub.s32 0, %v319
    %v321 = vrot.slane %v88, %v320
    %v323 = vadd.f32 %v298, %v321
    %v324 = vmul.f32 %v309, %v323
    %v325 = vadd.f32 %v92, %v324
    %v326 = vtanh.pop %v325
    %v327 = vsub.f32 %v89, %v326
    %v328 = vmul.f32 %v316, %v327
    %v329 = vadd.f32 %v326, %v328
    %330 = vst [vmem:[#allocation8] sm:$0xff] %v329
    %s331 = scalar_lea.vmem [#allocation3], 24
    %v332 = vld [vmem:[%s331] sm:$0xff]
    %v333 = vld [vmem:[%s331 + $0x8] sm:$0xff]
    %v334 = vld [vmem:[%s331 + $0x10] sm:$0xff]
    %v335 = vpack.c.bf16 %v329, %v329
    %336 = vmatprep.subr.bf16.mxu0 %v175
    %337 = vmatpush1.bf16.msra.mxu0 %v174
    %338 = vmatprep.subr.bf16.mxu0 %v178
    %339 = vmatpush1.bf16.msra.mxu0 %v177
    %340 = vmatprep.subr.bf16.mxu0 %v181
    %341 = vmatpush1.bf16.msra.mxu0 %v180
    %342 = vmatprep.subr.bf16.mxu0 %v184
    %343 = vmatpush1.bf16.msra.mxu0 %v183
    %344 = vmatprep.subr.bf16.mxu0 %v187
    %345 = vmatpush1.bf16.msra.mxu0 %v186
    %346 = vmatprep.subr.bf16.mxu0 %v190
    %347 = vmatpush1.bf16.msra.mxu0 %v189
    %348 = vmatprep.subr.bf16.mxu0 %v193
    %349 = vmatpush1.bf16.msra.mxu0 %v192
    %350 = vmatprep.subr.bf16.mxu0 %v196
    %351 = vmatpush1.bf16.msra.mxu0 %v195
    %352 = vmatprep.subr.bf16.mxu0 0
    %353 = vmatpush1.bf16.msra.mxu0 0
    %354 = vmatprep.subr.bf16.mxu0 0
    %355 = vmatpush1.bf16.msra.mxu0 0
    %356 = vmatprep.subr.bf16.mxu0 0
    %357 = vmatpush1.bf16.msra.mxu0 0
    %358 = vmatprep.subr.bf16.mxu0 0
    %359 = vmatpush1.bf16.msra.mxu0 0
    %360 = vmatprep.subr.bf16.mxu0 0
    %361 = vmatpush1.bf16.msra.mxu0 0
    %362 = vmatprep.subr.bf16.mxu0 0
    %363 = vmatpush1.bf16.msra.mxu0 0
    %364 = vmatprep.subr.bf16.mxu0 0
    %365 = vmatpush1.bf16.msra.mxu0 0
    %366 = vmatprep.subr.bf16.mxu0 0
    %367 = vmatpush1.bf16.msra.mxu0 0
    %368 = vmatprep.mubr.bf16.mxu0 0
    %369 = vmatmul.mubr.bf16.gmra.mrb[0].mxu0 %v335
    %v370 = vpop.f32.mrb[0].mxu0
    %v371 = vadd.f32 0.0, %v370
    %v372 = vpop.f32.mrb[0].mxu0
    %v373 = vadd.f32 0.0, %v372
    %v374 = vpop.f32.mrb[0].mxu0
    %v375 = vpop.f32.mrb[0].mxu0
    %376 = vdwg.mxu0
    %377 = vmatprep.subr.bf16.mxu0 0
    %378 = vmatpush1.bf16.msra.mxu0 %v176
    %379 = vmatprep.subr.bf16.mxu0 0
    %380 = vmatpush1.bf16.msra.mxu0 %v179
    %381 = vmatprep.subr.bf16.mxu0 0
    %382 = vmatpush1.bf16.msra.mxu0 %v182
    %383 = vmatprep.subr.bf16.mxu0 0
    %384 = vmatpush1.bf16.msra.mxu0 %v185
    %385 = vmatprep.subr.bf16.mxu0 0
    %386 = vmatpush1.bf16.msra.mxu0 %v188
    %387 = vmatprep.subr.bf16.mxu0 0
    %388 = vmatpush1.bf16.msra.mxu0 %v191
    %389 = vmatprep.subr.bf16.mxu0 0
    %390 = vmatpush1.bf16.msra.mxu0 %v194
    %391 = vmatprep.subr.bf16.mxu0 0
    %392 = vmatpush1.bf16.msra.mxu0 %v197
    %393 = vmatprep.subr.bf16.mxu0 0
    %394 = vmatpush1.bf16.msra.mxu0 0
    %395 = vmatprep.subr.bf16.mxu0 0
    %396 = vmatpush1.bf16.msra.mxu0 0
    %397 = vmatprep.subr.bf16.mxu0 0
    %398 = vmatpush1.bf16.msra.mxu0 0
    %399 = vmatprep.subr.bf16.mxu0 0
    %400 = vmatpush1.bf16.msra.mxu0 0
    %401 = vmatprep.subr.bf16.mxu0 0
    %402 = vmatpush1.bf16.msra.mxu0 0
    %403 = vmatprep.subr.bf16.mxu0 0
    %404 = vmatpush1.bf16.msra.mxu0 0
    %405 = vmatprep.subr.bf16.mxu0 0
    %406 = vmatpush1.bf16.msra.mxu0 0
    %407 = vmatprep.subr.bf16.mxu0 0
    %408 = vmatpush1.bf16.msra.mxu0 0
    %409 = vmatprep.mubr.bf16.mxu0 0
    %410 = vmatmul.mubr.bf16.gmra.mrb[0].mxu0 %v335
    %v411 = vpop.f32.mrb[0].mxu0
    %v412 = vadd.f32 0.0, %v411
    %v413 = vpop.f32.mrb[0].mxu0
    %v414 = vpop.f32.mrb[0].mxu0
    %v415 = vpop.f32.mrb[0].mxu0
    %416 = vdwg.mxu0
    %v417 = vadd.f32 %v332, %v371
    %v418 = vxor.u32 %v417, 2147483648
    %v419 = vmul.f32 %v418, 1.442695
    %v420 = vpow.pop %v419
    %v421 = vadd.f32 %v420, 1.0
    %v422 = vrcp.pop %v421
    %v423 = vmul.f32 1.0, %v422
    %v424 = vadd.f32 %v333, %v373
    %v425 = vxor.u32 %v424, 2147483648
    %v426 = vmul.f32 %v425, 1.442695
    %v427 = vpow.pop %v426
    %v428 = vadd.f32 %v427, 1.0
    %v429 = vrcp.pop %v428
    %v430 = vmul.f32 1.0, %v429
    %v431 = vadd.f32 %v412, %v321
    %v432 = vmul.f32 %v423, %v431
    %v433 = vadd.f32 %v334, %v432
    %v434 = vtanh.pop %v433
    %v435 = vsub.f32 %v329, %v434
    %v436 = vmul.f32 %v430, %v435
    %v437 = vadd.f32 %v434, %v436
    %s438 = scalar_lea.vmem [#allocation8], 8
    %439 = vst [vmem:[%s438] sm:$0xff] %v437
    %s440 = scalar_lea.vmem [#allocation3], 48
    %v441 = vld [vmem:[%s440] sm:$0xff]
    %v442 = vld [vmem:[%s440 + $0x8] sm:$0xff]
    %v443 = vld [vmem:[%s440 + $0x10] sm:$0xff]
    %v444 = vpack.c.bf16 %v437, %v437
    %445 = vmatprep.subr.bf16.mxu0 %v175
    %446 = vmatpush1.bf16.msra.mxu0 %v174
    %447 = vmatprep.subr.bf16.mxu0 %v178
    %448 = vmatpush1.bf16.msra.mxu0 %v177
    %449 = vmatprep.subr.bf16.mxu0 %v181
    %450 = vmatpush1.bf16.msra.mxu0 %v180
    %451 = vmatprep.subr.bf16.mxu0 %v184
    %452 = vmatpush1.bf16.msra.mxu0 %v183
    %453 = vmatprep.subr.bf16.mxu0 %v187
    %454 = vmatpush1.bf16.msra.mxu0 %v186
    %455 = vmatprep.subr.bf16.mxu0 %v190
    %456 = vmatpush1.bf16.msra.mxu0 %v189
    %457 = vmatprep.subr.bf16.mxu0 %v193
    %458 = vmatpush1.bf16.msra.mxu0 %v192
    %459 = vmatprep.subr.bf16.mxu0 %v196
    %460 = vmatpush1.bf16.msra.mxu0 %v195
    %461 = vmatprep.subr.bf16.mxu0 0
    %462 = vmatpush1.bf16.msra.mxu0 0
    %463 = vmatprep.subr.bf16.mxu0 0
    %464 = vmatpush1.bf16.msra.mxu0 0
    %465 = vmatprep.subr.bf16.mxu0 0
    %466 = vmatpush1.bf16.msra.mxu0 0
    %467 = vmatprep.subr.bf16.mxu0 0
    %468 = vmatpush1.bf16.msra.mxu0 0
    %469 = vmatprep.subr.bf16.mxu0 0
    %470 = vmatpush1.bf16.msra.mxu0 0
    %471 = vmatprep.subr.bf16.mxu0 0
    %472 = vmatpush1.bf16.msra.mxu0 0
    %473 = vmatprep.subr.bf16.mxu0 0
    %474 = vmatpush1.bf16.msra.mxu0 0
    %475 = vmatprep.subr.bf16.mxu0 0
    %476 = vmatpush1.bf16.msra.mxu0 0
    %477 = vmatprep.mubr.bf16.mxu0 0
    %478 = vmatmul.mubr.bf16.gmra.mrb[0].mxu0 %v444
    %v479 = vpop.f32.mrb[0].mxu0
    %v480 = vadd.f32 0.0, %v479
    %v481 = vpop.f32.mrb[0].mxu0
    %v482 = vadd.f32 0.0, %v481
    %v483 = vpop.f32.mrb[0].mxu0
    %v484 = vpop.f32.mrb[0].mxu0
    %485 = vdwg.mxu0
    %486 = vmatprep.subr.bf16.mxu0 0
    %487 = vmatpush1.bf16.msra.mxu0 %v176
    %488 = vmatprep.subr.bf16.mxu0 0
    %489 = vmatpush1.bf16.msra.mxu0 %v179
    %490 = vmatprep.subr.bf16.mxu0 0
    %491 = vmatpush1.bf16.msra.mxu0 %v182
    %492 = vmatprep.subr.bf16.mxu0 0
    %493 = vmatpush1.bf16.msra.mxu0 %v185
    %494 = vmatprep.subr.bf16.mxu0 0
    %495 = vmatpush1.bf16.msra.mxu0 %v188
    %496 = vmatprep.subr.bf16.mxu0 0
    %497 = vmatpush1.bf16.msra.mxu0 %v191
    %498 = vmatprep.subr.bf16.mxu0 0
    %499 = vmatpush1.bf16.msra.mxu0 %v194
    %500 = vmatprep.subr.bf16.mxu0 0
    %501 = vmatpush1.bf16.msra.mxu0 %v197
    %502 = vmatprep.subr.bf16.mxu0 0
    %503 = vmatpush1.bf16.msra.mxu0 0
    %504 = vmatprep.subr.bf16.mxu0 0
    %505 = vmatpush1.bf16.msra.mxu0 0
    %506 = vmatprep.subr.bf16.mxu0 0
    %507 = vmatpush1.bf16.msra.mxu0 0
    %508 = vmatprep.subr.bf16.mxu0 0
    %509 = vmatpush1.bf16.msra.mxu0 0
    %510 = vmatprep.subr.bf16.mxu0 0
    %511 = vmatpush1.bf16.msra.mxu0 0
    %512 = vmatprep.subr.bf16.mxu0 0
    %513 = vmatpush1.bf16.msra.mxu0 0
    %514 = vmatprep.subr.bf16.mxu0 0
    %515 = vmatpush1.bf16.msra.mxu0 0
    %516 = vmatprep.subr.bf16.mxu0 0
    %517 = vmatpush1.bf16.msra.mxu0 0
    %518 = vmatprep.mubr.bf16.mxu0 0
    %519 = vmatmul.mubr.bf16.gmra.mrb[0].mxu0 %v444
    %v520 = vpop.f32.mrb[0].mxu0
    %v521 = vadd.f32 0.0, %v520
    %v522 = vpop.f32.mrb[0].mxu0
    %v523 = vpop.f32.mrb[0].mxu0
    %v524 = vpop.f32.mrb[0].mxu0
    %525 = vdwg.mxu0
    %v526 = vadd.f32 %v441, %v480
    %v527 = vxor.u32 %v526, 2147483648
    %v528 = vmul.f32 %v527, 1.442695
    %v529 = vpow.pop %v528
    %v530 = vadd.f32 %v529, 1.0
    %v531 = vrcp.pop %v530
    %v532 = vmul.f32 1.0, %v531
    %v533 = vadd.f32 %v442, %v482
    %v534 = vxor.u32 %v533, 2147483648
    %v535 = vmul.f32 %v534, 1.442695
    %v536 = vpow.pop %v535
    %v537 = vadd.f32 %v536, 1.0
    %v538 = vrcp.pop %v537
    %v539 = vmul.f32 1.0, %v538
    %v540 = vadd.f32 %v521, %v321
    %v541 = vmul.f32 %v532, %v540
    %v542 = vadd.f32 %v443, %v541
    %v543 = vtanh.pop %v542
    %v544 = vsub.f32 %v437, %v543
    %v545 = vmul.f32 %v539, %v544
    %v546 = vadd.f32 %v543, %v545
    %s547 = scalar_lea.vmem [#allocation8], 16
    %548 = vst [vmem:[%s547] sm:$0xff] %v546
    %s549 = scalar_lea.vmem [#allocation3], 72
    %v550 = vld [vmem:[%s549] sm:$0xff]
    %v551 = vld [vmem:[%s549 + $0x8] sm:$0xff]
    %v552 = vld [vmem:[%s549 + $0x10] sm:$0xff]
    %v553 = vpack.c.bf16 %v546, %v546
    %554 = vmatprep.subr.bf16.mxu0 %v175
    %555 = vmatpush1.bf16.msra.mxu0 %v174
    %556 = vmatprep.subr.bf16.mxu0 %v178
    %557 = vmatpush1.bf16.msra.mxu0 %v177
    %558 = vmatprep.subr.bf16.mxu0 %v181
    %559 = vmatpush1.bf16.msra.mxu0 %v180
    %560 = vmatprep.subr.bf16.mxu0 %v184
    %561 = vmatpush1.bf16.msra.mxu0 %v183
    %562 = vmatprep.subr.bf16.mxu0 %v187
    %563 = vmatpush1.bf16.msra.mxu0 %v186
    %564 = vmatprep.subr.bf16.mxu0 %v190
    %565 = vmatpush1.bf16.msra.mxu0 %v189
    %566 = vmatprep.subr.bf16.mxu0 %v193
    %567 = vmatpush1.bf16.msra.mxu0 %v192
    %568 = vmatprep.subr.bf16.mxu0 %v196
    %569 = vmatpush1.bf16.msra.mxu0 %v195
    %570 = vmatprep.subr.bf16.mxu0 0
    %571 = vmatpush1.bf16.msra.mxu0 0
    %572 = vmatprep.subr.bf16.mxu0 0
    %573 = vmatpush1.bf16.msra.mxu0 0
    %574 = vmatprep.subr.bf16.mxu0 0
    %575 = vmatpush1.bf16.msra.mxu0 0
    %576 = vmatprep.subr.bf16.mxu0 0
    %577 = vmatpush1.bf16.msra.mxu0 0
    %578 = vmatprep.subr.bf16.mxu0 0
    %579 = vmatpush1.bf16.msra.mxu0 0
    %580 = vmatprep.subr.bf16.mxu0 0
    %581 = vmatpush1.bf16.msra.mxu0 0
    %582 = vmatprep.subr.bf16.mxu0 0
    %583 = vmatpush1.bf16.msra.mxu0 0
    %584 = vmatprep.subr.bf16.mxu0 0
    %585 = vmatpush1.bf16.msra.mxu0 0
    %586 = vmatprep.mubr.bf16.mxu0 0
    %587 = vmatmul.mubr.bf16.gmra.mrb[0].mxu0 %v553
    %v588 = vpop.f32.mrb[0].mxu0
    %v589 = vadd.f32 0.0, %v588
    %v590 = vpop.f32.mrb[0].mxu0
    %v591 = vadd.f32 0.0, %v590
    %v592 = vpop.f32.mrb[0].mxu0
    %v593 = vpop.f32.mrb[0].mxu0
    %594 = vdwg.mxu0
    %595 = vmatprep.subr.bf16.mxu0 0
    %596 = vmatpush1.bf16.msra.mxu0 %v176
    %597 = vmatprep.subr.bf16.mxu0 0
    %598 = vmatpush1.bf16.msra.mxu0 %v179
    %599 = vmatprep.subr.bf16.mxu0 0
    %600 = vmatpush1.bf16.msra.mxu0 %v182
    %601 = vmatprep.subr.bf16.mxu0 0
    %602 = vmatpush1.bf16.msra.mxu0 %v185
    %603 = vmatprep.subr.bf16.mxu0 0
    %604 = vmatpush1.bf16.msra.mxu0 %v188
    %605 = vmatprep.subr.bf16.mxu0 0
    %606 = vmatpush1.bf16.msra.mxu0 %v191
    %607 = vmatprep.subr.bf16.mxu0 0
    %608 = vmatpush1.bf16.msra.mxu0 %v194
    %609 = vmatprep.subr.bf16.mxu0 0
    %610 = vmatpush1.bf16.msra.mxu0 %v197
    %611 = vmatprep.subr.bf16.mxu0 0
    %612 = vmatpush1.bf16.msra.mxu0 0
    %613 = vmatprep.subr.bf16.mxu0 0
    %614 = vmatpush1.bf16.msra.mxu0 0
    %615 = vmatprep.subr.bf16.mxu0 0
    %616 = vmatpush1.bf16.msra.mxu0 0
    %617 = vmatprep.subr.bf16.mxu0 0
    %618 = vmatpush1.bf16.msra.mxu0 0
    %619 = vmatprep.subr.bf16.mxu0 0
    %620 = vmatpush1.bf16.msra.mxu0 0
    %621 = vmatprep.subr.bf16.mxu0 0
    %622 = vmatpush1.bf16.msra.mxu0 0
    %623 = vmatprep.subr.bf16.mxu0 0
    %624 = vmatpush1.bf16.msra.mxu0 0
    %625 = vmatprep.subr.bf16.mxu0 0
    %626 = vmatpush1.bf16.msra.mxu0 0
    %627 = vmatprep.mubr.bf16.mxu0 0
    %628 = vmatmul.mubr.bf16.gmra.mrb[0].mxu0 %v553
    %v629 = vpop.f32.mrb[0].mxu0
    %v630 = vadd.f32 0.0, %v629
    %v631 = vpop.f32.mrb[0].mxu0
    %v632 = vpop.f32.mrb[0].mxu0
    %v633 = vpop.f32.mrb[0].mxu0
    %634 = vdwg.mxu0
    %v635 = vadd.f32 %v550, %v589
    %v636 = vxor.u32 %v635, 2147483648
    %v637 = vmul.f32 %v636, 1.442695
    %v638 = vpow.pop %v637
    %v639 = vadd.f32 %v638, 1.0
    %v640 = vrcp.pop %v639
    %v641 = vmul.f32 1.0, %v640
    %v642 = vadd.f32 %v551, %v591
    %v643 = vxor.u32 %v642, 2147483648
    %v644 = vmul.f32 %v643, 1.442695
    %v645 = vpow.pop %v644
    %v646 = vadd.f32 %v645, 1.0
    %v647 = vrcp.pop %v646
    %v648 = vmul.f32 1.0, %v647
    %v649 = vadd.f32 %v630, %v321
    %v650 = vmul.f32 %v641, %v649
    %v651 = vadd.f32 %v552, %v650
    %v652 = vtanh.pop %v651
    %v653 = vsub.f32 %v546, %v652
    %v654 = vmul.f32 %v648, %v653
    %v655 = vadd.f32 %v652, %v654
    %s656 = scalar_lea.vmem [#allocation8], 24
    %657 = vst [vmem:[%s656] sm:$0xff] %v655
    %s658 = scalar_lea.vmem [#allocation3], 96
    %v659 = vld [vmem:[%s658] sm:$0xff]
    %v660 = vld [vmem:[%s658 + $0x8] sm:$0xff]
    %v661 = vld [vmem:[%s658 + $0x10] sm:$0xff]
    %v662 = vpack.c.bf16 %v655, %v655
    %663 = vmatprep.subr.bf16.mxu0 %v175
    %664 = vmatpush1.bf16.msra.mxu0 %v174
    %665 = vmatprep.subr.bf16.mxu0 %v178
    %666 = vmatpush1.bf16.msra.mxu0 %v177
    %667 = vmatprep.subr.bf16.mxu0 %v181
    %668 = vmatpush1.bf16.msra.mxu0 %v180
    %669 = vmatprep.subr.bf16.mxu0 %v184
    %670 = vmatpush1.bf16.msra.mxu0 %v183
    %671 = vmatprep.subr.bf16.mxu0 %v187
    %672 = vmatpush1.bf16.msra.mxu0 %v186
    %673 = vmatprep.subr.bf16.mxu0 %v190
    %674 = vmatpush1.bf16.msra.mxu0 %v189
    %675 = vmatprep.subr.bf16.mxu0 %v193
    %676 = vmatpush1.bf16.msra.mxu0 %v192
    %677 = vmatprep.subr.bf16.mxu0 %v196
    %678 = vmatpush1.bf16.msra.mxu0 %v195
    %679 = vmatprep.subr.bf16.mxu0 0
    %680 = vmatpush1.bf16.msra.mxu0 0
    %681 = vmatprep.subr.bf16.mxu0 0
    %682 = vmatpush1.bf16.msra.mxu0 0
    %683 = vmatprep.subr.bf16.mxu0 0
    %684 = vmatpush1.bf16.msra.mxu0 0
    %685 = vmatprep.subr.bf16.mxu0 0
    %686 = vmatpush1.bf16.msra.mxu0 0
    %687 = vmatprep.subr.bf16.mxu0 0
    %688 = vmatpush1.bf16.msra.mxu0 0
    %689 = vmatprep.subr.bf16.mxu0 0
    %690 = vmatpush1.bf16.msra.mxu0 0
    %691 = vmatprep.subr.bf16.mxu0 0
    %692 = vmatpush1.bf16.msra.mxu0 0
    %693 = vmatprep.subr.bf16.mxu0 0
    %694 = vmatpush1.bf16.msra.mxu0 0
    %695 = vmatprep.mubr.bf16.mxu0 0
    %696 = vmatmul.mubr.bf16.gmra.mrb[0].mxu0 %v662
    %v697 = vpop.f32.mrb[0].mxu0
    %v698 = vadd.f32 0.0, %v697
    %v699 = vpop.f32.mrb[0].mxu0
    %v700 = vadd.f32 0.0, %v699
    %v701 = vpop.f32.mrb[0].mxu0
    %v702 = vpop.f32.mrb[0].mxu0
    %703 = vdwg.mxu0
    %704 = vmatprep.subr.bf16.mxu0 0
    %705 = vmatpush1.bf16.msra.mxu0 %v176
    %706 = vmatprep.subr.bf16.mxu0 0
    %707 = vmatpush1.bf16.msra.mxu0 %v179
    %708 = vmatprep.subr.bf16.mxu0 0
    %709 = vmatpush1.bf16.msra.mxu0 %v182
    %710 = vmatprep.subr.bf16.mxu0 0
    %711 = vmatpush1.bf16.msra.mxu0 %v185
    %712 = vmatprep.subr.bf16.mxu0 0
    %713 = vmatpush1.bf16.msra.mxu0 %v188
    %714 = vmatprep.subr.bf16.mxu0 0
    %715 = vmatpush1.bf16.msra.mxu0 %v191
    %716 = vmatprep.subr.bf16.mxu0 0
    %717 = vmatpush1.bf16.msra.mxu0 %v194
    %718 = vmatprep.subr.bf16.mxu0 0
    %719 = vmatpush1.bf16.msra.mxu0 %v197
    %720 = vmatprep.subr.bf16.mxu0 0
    %721 = vmatpush1.bf16.msra.mxu0 0
    %722 = vmatprep.subr.bf16.mxu0 0
    %723 = vmatpush1.bf16.msra.mxu0 0
    %724 = vmatprep.subr.bf16.mxu0 0
    %725 = vmatpush1.bf16.msra.mxu0 0
    %726 = vmatprep.subr.bf16.mxu0 0
    %727 = vmatpush1.bf16.msra.mxu0 0
    %728 = vmatprep.subr.bf16.mxu0 0
    %729 = vmatpush1.bf16.msra.mxu0 0
    %730 = vmatprep.subr.bf16.mxu0 0
    %731 = vmatpush1.bf16.msra.mxu0 0
    %732 = vmatprep.subr.bf16.mxu0 0
    %733 = vmatpush1.bf16.msra.mxu0 0
    %734 = vmatprep.subr.bf16.mxu0 0
    %735 = vmatpush1.bf16.msra.mxu0 0
    %736 = vmatprep.mubr.bf16.mxu0 0
    %737 = vmatmul.mubr.bf16.gmra.mrb[0].mxu0 %v662
    %v738 = vpop.f32.mrb[0].mxu0
    %v739 = vadd.f32 0.0, %v738
    %v740 = vpop.f32.mrb[0].mxu0
    %v741 = vpop.f32.mrb[0].mxu0
    %v742 = vpop.f32.mrb[0].mxu0
    %743 = vdwg.mxu0
    %v744 = vadd.f32 %v659, %v698
    %v745 = vxor.u32 %v744, 2147483648
    %v746 = vmul.f32 %v745, 1.442695
    %v747 = vpow.pop %v746
    %v748 = vadd.f32 %v747, 1.0
    %v749 = vrcp.pop %v748
    %v750 = vmul.f32 1.0, %v749
    %v751 = vadd.f32 %v660, %v700
    %v752 = vxor.u32 %v751, 2147483648
    %v753 = vmul.f32 %v752, 1.442695
    %v754 = vpow.pop %v753
    %v755 = vadd.f32 %v754, 1.0
    %v756 = vrcp.pop %v755
    %v757 = vmul.f32 1.0, %v756
    %v758 = vadd.f32 %v739, %v321
    %v759 = vmul.f32 %v750, %v758
    %v760 = vadd.f32 %v661, %v759
    %v761 = vtanh.pop %v760
    %v762 = vsub.f32 %v655, %v761
    %v763 = vmul.f32 %v757, %v762
    %v764 = vadd.f32 %v761, %v763
    %s765 = scalar_lea.vmem [#allocation8], 32
    %766 = vst [vmem:[%s765] sm:$0xff] %v764
    %s767 = scalar_lea.vmem [#allocation3], 120
    %v768 = vld [vmem:[%s767] sm:$0xff]
    %v769 = vld [vmem:[%s767 + $0x8] sm:$0xff]
    %v770 = vld [vmem:[%s767 + $0x10] sm:$0xff]
    %v771 = vpack.c.bf16 %v764, %v764
    %772 = vmatprep.subr.bf16.mxu0 %v175
    %773 = vmatpush1.bf16.msra.mxu0 %v174
    %774 = vmatprep.subr.bf16.mxu0 %v178
    %775 = vmatpush1.bf16.msra.mxu0 %v177
    %776 = vmatprep.subr.bf16.mxu0 %v181
    %777 = vmatpush1.bf16.msra.mxu0 %v180
    %778 = vmatprep.subr.bf16.mxu0 %v184
    %779 = vmatpush1.bf16.msra.mxu0 %v183
    %780 = vmatprep.subr.bf16.mxu0 %v187
    %781 = vmatpush1.bf16.msra.mxu0 %v186
    %782 = vmatprep.subr.bf16.mxu0 %v190
    %783 = vmatpush1.bf16.msra.mxu0 %v189
    %784 = vmatprep.subr.bf16.mxu0 %v193
    %785 = vmatpush1.bf16.msra.mxu0 %v192
    %786 = vmatprep.subr.bf16.mxu0 %v196
    %787 = vmatpush1.bf16.msra.mxu0 %v195
    %788 = vmatprep.subr.bf16.mxu0 0
    %789 = vmatpush1.bf16.msra.mxu0 0
    %790 = vmatprep.subr.bf16.mxu0 0
    %791 = vmatpush1.bf16.msra.mxu0 0
    %792 = vmatprep.subr.bf16.mxu0 0
    %793 = vmatpush1.bf16.msra.mxu0 0
    %794 = vmatprep.subr.bf16.mxu0 0
    %795 = vmatpush1.bf16.msra.mxu0 0
    %796 = vmatprep.subr.bf16.mxu0 0
    %797 = vmatpush1.bf16.msra.mxu0 0
    %798 = vmatprep.subr.bf16.mxu0 0
    %799 = vmatpush1.bf16.msra.mxu0 0
    %800 = vmatprep.subr.bf16.mxu0 0
    %801 = vmatpush1.bf16.msra.mxu0 0
    %802 = vmatprep.subr.bf16.mxu0 0
    %803 = vmatpush1.bf16.msra.mxu0 0
    %804 = vmatprep.mubr.bf16.mxu0 0
    %805 = vmatmul.mubr.bf16.gmra.mrb[0].mxu0 %v771
    %v806 = vpop.f32.mrb[0].mxu0
    %v807 = vadd.f32 0.0, %v806
    %v808 = vpop.f32.mrb[0].mxu0
    %v809 = vadd.f32 0.0, %v808
    %v810 = vpop.f32.mrb[0].mxu0
    %v811 = vpop.f32.mrb[0].mxu0
    %812 = vdwg.mxu0
    %813 = vmatprep.subr.bf16.mxu0 0
    %814 = vmatpush1.bf16.msra.mxu0 %v176
    %815 = vmatprep.subr.bf16.mxu0 0
    %816 = vmatpush1.bf16.msra.mxu0 %v179
    %817 = vmatprep.subr.bf16.mxu0 0
    %818 = vmatpush1.bf16.msra.mxu0 %v182
    %819 = vmatprep.subr.bf16.mxu0 0
    %820 = vmatpush1.bf16.msra.mxu0 %v185
    %821 = vmatprep.subr.bf16.mxu0 0
    %822 = vmatpush1.bf16.msra.mxu0 %v188
    %823 = vmatprep.subr.bf16.mxu0 0
    %824 = vmatpush1.bf16.msra.mxu0 %v191
    %825 = vmatprep.subr.bf16.mxu0 0
    %826 = vmatpush1.bf16.msra.mxu0 %v194
    %827 = vmatprep.subr.bf16.mxu0 0
    %828 = vmatpush1.bf16.msra.mxu0 %v197
    %829 = vmatprep.subr.bf16.mxu0 0
    %830 = vmatpush1.bf16.msra.mxu0 0
    %831 = vmatprep.subr.bf16.mxu0 0
    %832 = vmatpush1.bf16.msra.mxu0 0
    %833 = vmatprep.subr.bf16.mxu0 0
    %834 = vmatpush1.bf16.msra.mxu0 0
    %835 = vmatprep.subr.bf16.mxu0 0
    %836 = vmatpush1.bf16.msra.mxu0 0
    %837 = vmatprep.subr.bf16.mxu0 0
    %838 = vmatpush1.bf16.msra.mxu0 0
    %839 = vmatprep.subr.bf16.mxu0 0
    %840 = vmatpush1.bf16.msra.mxu0 0
    %841 = vmatprep.subr.bf16.mxu0 0
    %842 = vmatpush1.bf16.msra.mxu0 0
    %843 = vmatprep.subr.bf16.mxu0 0
    %844 = vmatpush1.bf16.msra.mxu0 0
    %845 = vmatprep.mubr.bf16.mxu0 0
    %846 = vmatmul.mubr.bf16.gmra.mrb[0].mxu0 %v771
    %v847 = vpop.f32.mrb[0].mxu0
    %v848 = vadd.f32 0.0, %v847
    %v849 = vpop.f32.mrb[0].mxu0
    %v850 = vpop.f32.mrb[0].mxu0
    %v851 = vpop.f32.mrb[0].mxu0
    %852 = vdwg.mxu0
    %v853 = vadd.f32 %v768, %v807
    %v854 = vxor.u32 %v853, 2147483648
    %v855 = vmul.f32 %v854, 1.442695
    %v856 = vpow.pop %v855
    %v857 = vadd.f32 %v856, 1.0
    %v858 = vrcp.pop %v857
    %v859 = vmul.f32 1.0, %v858
    %v860 = vadd.f32 %v769, %v809
    %v861 = vxor.u32 %v860, 2147483648
    %v862 = vmul.f32 %v861, 1.442695
    %v863 = vpow.pop %v862
    %v864 = vadd.f32 %v863, 1.0
    %v865 = vrcp.pop %v864
    %v866 = vmul.f32 1.0, %v865
    %v867 = vadd.f32 %v848, %v321
    %v868 = vmul.f32 %v859, %v867
    %v869 = vadd.f32 %v770, %v868
    %v870 = vtanh.pop %v869
    %v871 = vsub.f32 %v764, %v870
    %v872 = vmul.f32 %v866, %v871
    %v873 = vadd.f32 %v870, %v872
    %s874 = scalar_lea.vmem [#allocation8], 40
    %875 = vst [vmem:[%s874] sm:$0xff] %v873
    %s876 = scalar_lea.vmem [#allocation3], 144
    %v877 = vld [vmem:[%s876] sm:$0xff]
    %v878 = vld [vmem:[%s876 + $0x8] sm:$0xff]
    %v879 = vld [vmem:[%s876 + $0x10] sm:$0xff]
    %v880 = vpack.c.bf16 %v873, %v873
    %881 = vmatprep.subr.bf16.mxu0 %v175
    %882 = vmatpush1.bf16.msra.mxu0 %v174
    %883 = vmatprep.subr.bf16.mxu0 %v178
    %884 = vmatpush1.bf16.msra.mxu0 %v177
    %885 = vmatprep.subr.bf16.mxu0 %v181
    %886 = vmatpush1.bf16.msra.mxu0 %v180
    %887 = vmatprep.subr.bf16.mxu0 %v184
    %888 = vmatpush1.bf16.msra.mxu0 %v183
    %889 = vmatprep.subr.bf16.mxu0 %v187
    %890 = vmatpush1.bf16.msra.mxu0 %v186
    %891 = vmatprep.subr.bf16.mxu0 %v190
    %892 = vmatpush1.bf16.msra.mxu0 %v189
    %893 = vmatprep.subr.bf16.mxu0 %v193
    %894 = vmatpush1.bf16.msra.mxu0 %v192
    %895 = vmatprep.subr.bf16.mxu0 %v196
    %896 = vmatpush1.bf16.msra.mxu0 %v195
    %897 = vmatprep.subr.bf16.mxu0 0
    %898 = vmatpush1.bf16.msra.mxu0 0
    %899 = vmatprep.subr.bf16.mxu0 0
    %900 = vmatpush1.bf16.msra.mxu0 0
    %901 = vmatprep.subr.bf16.mxu0 0
    %902 = vmatpush1.bf16.msra.mxu0 0
    %903 = vmatprep.subr.bf16.mxu0 0
    %904 = vmatpush1.bf16.msra.mxu0 0
    %905 = vmatprep.subr.bf16.mxu0 0
    %906 = vmatpush1.bf16.msra.mxu0 0
    %907 = vmatprep.subr.bf16.mxu0 0
    %908 = vmatpush1.bf16.msra.mxu0 0
    %909 = vmatprep.subr.bf16.mxu0 0
    %910 = vmatpush1.bf16.msra.mxu0 0
    %911 = vmatprep.subr.bf16.mxu0 0
    %912 = vmatpush1.bf16.msra.mxu0 0
    %913 = vmatprep.mubr.bf16.mxu0 0
    %914 = vmatmul.mubr.bf16.gmra.mrb[0].mxu0 %v880
    %v915 = vpop.f32.mrb[0].mxu0
    %v916 = vadd.f32 0.0, %v915
    %v917 = vpop.f32.mrb[0].mxu0
    %v918 = vadd.f32 0.0, %v917
    %v919 = vpop.f32.mrb[0].mxu0
    %v920 = vpop.f32.mrb[0].mxu0
    %921 = vdwg.mxu0
    %922 = vmatprep.subr.bf16.mxu0 0
    %923 = vmatpush1.bf16.msra.mxu0 %v176
    %924 = vmatprep.subr.bf16.mxu0 0
    %925 = vmatpush1.bf16.msra.mxu0 %v179
    %926 = vmatprep.subr.bf16.mxu0 0
    %927 = vmatpush1.bf16.msra.mxu0 %v182
    %928 = vmatprep.subr.bf16.mxu0 0
    %929 = vmatpush1.bf16.msra.mxu0 %v185
    %930 = vmatprep.subr.bf16.mxu0 0
    %931 = vmatpush1.bf16.msra.mxu0 %v188
    %932 = vmatprep.subr.bf16.mxu0 0
    %933 = vmatpush1.bf16.msra.mxu0 %v191
    %934 = vmatprep.subr.bf16.mxu0 0
    %935 = vmatpush1.bf16.msra.mxu0 %v194
    %936 = vmatprep.subr.bf16.mxu0 0
    %937 = vmatpush1.bf16.msra.mxu0 %v197
    %938 = vmatprep.subr.bf16.mxu0 0
    %939 = vmatpush1.bf16.msra.mxu0 0
    %940 = vmatprep.subr.bf16.mxu0 0
    %941 = vmatpush1.bf16.msra.mxu0 0
    %942 = vmatprep.subr.bf16.mxu0 0
    %943 = vmatpush1.bf16.msra.mxu0 0
    %944 = vmatprep.subr.bf16.mxu0 0
    %945 = vmatpush1.bf16.msra.mxu0 0
    %946 = vmatprep.subr.bf16.mxu0 0
    %947 = vmatpush1.bf16.msra.mxu0 0
    %948 = vmatprep.subr.bf16.mxu0 0
    %949 = vmatpush1.bf16.msra.mxu0 0
    %950 = vmatprep.subr.bf16.mxu0 0
    %951 = vmatpush1.bf16.msra.mxu0 0
    %952 = vmatprep.subr.bf16.mxu0 0
    %953 = vmatpush1.bf16.msra.mxu0 0
    %954 = vmatprep.mubr.bf16.mxu0 0
    %955 = vmatmul.mubr.bf16.gmra.mrb[0].mxu0 %v880
    %v956 = vpop.f32.mrb[0].mxu0
    %v957 = vadd.f32 0.0, %v956
    %v958 = vpop.f32.mrb[0].mxu0
    %v959 = vpop.f32.mrb[0].mxu0
    %v960 = vpop.f32.mrb[0].mxu0
    %961 = vdwg.mxu0
    %v962 = vadd.f32 %v877, %v916
    %v963 = vxor.u32 %v962, 2147483648
    %v964 = vmul.f32 %v963, 1.442695
    %v965 = vpow.pop %v964
    %v966 = vadd.f32 %v965, 1.0
    %v967 = vrcp.pop %v966
    %v968 = vmul.f32 1.0, %v967
    %v969 = vadd.f32 %v878, %v918
    %v970 = vxor.u32 %v969, 2147483648
    %v971 = vmul.f32 %v970, 1.442695
    %v972 = vpow.pop %v971
    %v973 = vadd.f32 %v972, 1.0
    %v974 = vrcp.pop %v973
    %v975 = vmul.f32 1.0, %v974
    %v976 = vadd.f32 %v957, %v321
    %v977 = vmul.f32 %v968, %v976
    %v978 = vadd.f32 %v879, %v977
    %v979 = vtanh.pop %v978
    %v980 = vsub.f32 %v873, %v979
    %v981 = vmul.f32 %v975, %v980
    %v982 = vadd.f32 %v979, %v981
    %s983 = scalar_lea.vmem [#allocation8], 48
    %984 = vst [vmem:[%s983] sm:$0xff] %v982
    %s985 = scalar_lea.vmem [#allocation3], 168
    %v986 = vld [vmem:[%s985] sm:$0xff]
    %v987 = vld [vmem:[%s985 + $0x8] sm:$0xff]
    %v988 = vld [vmem:[%s985 + $0x10] sm:$0xff]
    %v989 = vpack.c.bf16 %v982, %v982
    %990 = vmatprep.subr.bf16.mxu0 %v175
    %991 = vmatpush1.bf16.msra.mxu0 %v174
    %992 = vmatprep.subr.bf16.mxu0 %v178
    %993 = vmatpush1.bf16.msra.mxu0 %v177
    %994 = vmatprep.subr.bf16.mxu0 %v181
    %995 = vmatpush1.bf16.msra.mxu0 %v180
    %996 = vmatprep.subr.bf16.mxu0 %v184
    %997 = vmatpush1.bf16.msra.mxu0 %v183
    %998 = vmatprep.subr.bf16.mxu0 %v187
    %999 = vmatpush1.bf16.msra.mxu0 %v186
    %1000 = vmatprep.subr.bf16.mxu0 %v190
    %1001 = vmatpush1.bf16.msra.mxu0 %v189
    %1002 = vmatprep.subr.bf16.mxu0 %v193
    %1003 = vmatpush1.bf16.msra.mxu0 %v192
    %1004 = vmatprep.subr.bf16.mxu0 %v196
    %1005 = vmatpush1.bf16.msra.mxu0 %v195
    %1006 = vmatprep.subr.bf16.mxu0 0
    %1007 = vmatpush1.bf16.msra.mxu0 0
    %1008 = vmatprep.subr.bf16.mxu0 0
    %1009 = vmatpush1.bf16.msra.mxu0 0
    %1010 = vmatprep.subr.bf16.mxu0 0
    %1011 = vmatpush1.bf16.msra.mxu0 0
    %1012 = vmatprep.subr.bf16.mxu0 0
    %1013 = vmatpush1.bf16.msra.mxu0 0
    %1014 = vmatprep.subr.bf16.mxu0 0
    %1015 = vmatpush1.bf16.msra.mxu0 0
    %1016 = vmatprep.subr.bf16.mxu0 0
    %1017 = vmatpush1.bf16.msra.mxu0 0
    %1018 = vmatprep.subr.bf16.mxu0 0
    %1019 = vmatpush1.bf16.msra.mxu0 0
    %1020 = vmatprep.subr.bf16.mxu0 0
    %1021 = vmatpush1.bf16.msra.mxu0 0
    %1022 = vmatprep.mubr.bf16.mxu0 0
    %1023 = vmatmul.mubr.bf16.gmra.mrb[0].mxu0 %v989
    %v1024 = vpop.f32.mrb[0].mxu0
    %v1025 = vadd.f32 0.0, %v1024
    %v1026 = vpop.f32.mrb[0].mxu0
    %v1027 = vadd.f32 0.0, %v1026
    %v1028 = vpop.f32.mrb[0].mxu0
    %v1029 = vpop.f32.mrb[0].mxu0
    %1030 = vdwg.mxu0
    %1031 = vmatprep.subr.bf16.mxu0 0
    %1032 = vmatpush1.bf16.msra.mxu0 %v176
    %1033 = vmatprep.subr.bf16.mxu0 0
    %1034 = vmatpush1.bf16.msra.mxu0 %v179
    %1035 = vmatprep.subr.bf16.mxu0 0
    %1036 = vmatpush1.bf16.msra.mxu0 %v182
    %1037 = vmatprep.subr.bf16.mxu0 0
    %1038 = vmatpush1.bf16.msra.mxu0 %v185
    %1039 = vmatprep.subr.bf16.mxu0 0
    %1040 = vmatpush1.bf16.msra.mxu0 %v188
    %1041 = vmatprep.subr.bf16.mxu0 0
    %1042 = vmatpush1.bf16.msra.mxu0 %v191
    %1043 = vmatprep.subr.bf16.mxu0 0
    %1044 = vmatpush1.bf16.msra.mxu0 %v194
    %1045 = vmatprep.subr.bf16.mxu0 0
    %1046 = vmatpush1.bf16.msra.mxu0 %v197
    %1047 = vmatprep.subr.bf16.mxu0 0
    %1048 = vmatpush1.bf16.msra.mxu0 0
    %1049 = vmatprep.subr.bf16.mxu0 0
    %1050 = vmatpush1.bf16.msra.mxu0 0
    %1051 = vmatprep.subr.bf16.mxu0 0
    %1052 = vmatpush1.bf16.msra.mxu0 0
    %1053 = vmatprep.subr.bf16.mxu0 0
    %1054 = vmatpush1.bf16.msra.mxu0 0
    %1055 = vmatprep.subr.bf16.mxu0 0
    %1056 = vmatpush1.bf16.msra.mxu0 0
    %1057 = vmatprep.subr.bf16.mxu0 0
    %1058 = vmatpush1.bf16.msra.mxu0 0
    %1059 = vmatprep.subr.bf16.mxu0 0
    %1060 = vmatpush1.bf16.msra.mxu0 0
    %1061 = vmatprep.subr.bf16.mxu0 0
    %1062 = vmatpush1.bf16.msra.mxu0 0
    %1063 = vmatprep.mubr.bf16.mxu0 0
    %1064 = vmatmul.mubr.bf16.gmra.mrb[0].mxu0 %v989
    %v1065 = vpop.f32.mrb[0].mxu0
    %v1066 = vadd.f32 0.0, %v1065
    %v1067 = vpop.f32.mrb[0].mxu0
    %v1068 = vpop.f32.mrb[0].mxu0
    %v1069 = vpop.f32.mrb[0].mxu0
    %1070 = vdwg.mxu0
    %v1071 = vadd.f32 %v986, %v1025
    %v1072 = vxor.u32 %v1071, 2147483648
    %v1073 = vmul.f32 %v1072, 1.442695
    %v1074 = vpow.pop %v1073
    %v1075 = vadd.f32 %v1074, 1.0
    %v1076 = vrcp.pop %v1075
    %v1077 = vmul.f32 1.0, %v1076
    %v1078 = vadd.f32 %v987, %v1027
    %v1079 = vxor.u32 %v1078, 2147483648
    %v1080 = vmul.f32 %v1079, 1.442695
    %v1081 = vpow.pop %v1080
    %v1082 = vadd.f32 %v1081, 1.0
    %v1083 = vrcp.pop %v1082
    %v1084 = vmul.f32 1.0, %v1083
    %v1085 = vadd.f32 %v1066, %v321
    %v1086 = vmul.f32 %v1077, %v1085
    %v1087 = vadd.f32 %v988, %v1086
    %v1088 = vtanh.pop %v1087
    %v1089 = vsub.f32 %v982, %v1088
    %v1090 = vmul.f32 %v1084, %v1089
    %v1091 = vadd.f32 %v1088, %v1090
    %s1092 = scalar_lea.vmem [#allocation8], 56
    %1093 = vst [vmem:[%s1092] sm:$0xff] %v1091
    %1094 = vst [vmem:[#allocation2] sm:$0xff] %v1091
    // Predicated region
    $region30: #{tpu_custom_call.1} parent=1 // pred_check
      %p1095 = pneg %p50
    $region31: #{tpu_custom_call.1} parent=1 // pred_check_branch
      %1097 = sbr.rel (%p1095) target = $region33
    $region32: #{tpu_custom_call.1} parent=1 // pred_region
      %1098 = vst [vmem:[#allocation9] sm:$0xff] %v1091
    $region33: #{tpu_custom_call.1} parent=1 // pred_fallthru
      _
    // Predicated region
    $region34: #{tpu_custom_call.1} parent=1 // pred_check
      _
    $region35: #{tpu_custom_call.1} parent=1 // pred_check_branch
      %1100 = sbr.rel (0) target = $region37
    $region36: #{tpu_custom_call.1} parent=1 // pred_region
      %s1102 = ssub.s32 1024, 1024
      %1103 = vsyncadd [#allocation5], %s1102
      %s1104 = sshll.u32 [#allocation8], 4
      %s1105 = int_to_ptr.vmem [resolvable:$true] %s1104
      %1110 = dma.vmem_to_hbm [thread:$0]  %s1105, 1024, %s4, [#allocation5], 128, 128, 8
    $region37: #{tpu_custom_call.1} parent=1 // pred_fallthru
      _
    // Predicated region
    $region38: #{tpu_custom_call.1} parent=1 // pred_check
      _
    $region39: #{tpu_custom_call.1} parent=1 // pred_check_branch
      %1112 = sbr.rel (0) target = $region41
    $region40: #{tpu_custom_call.1} parent=1 // pred_region
      %s1114 = ssub.s32 128, 128
      %1115 = vsyncadd [#allocation10], %s1114
      %s1117 = sshll.u32 [#allocation9], 4
      %s1118 = int_to_ptr.vmem [resolvable:$true] %s1117
      %1120 = dma.vmem_to_hbm [thread:$0]  %s1118, 128, %s5, [#allocation10]
    $region41: #{tpu_custom_call.1} parent=1 // pred_fallthru
      _
    // Predicated region
    $region42: #{tpu_custom_call.1} parent=1 // pred_check
      _
    $region43: #{tpu_custom_call.1} parent=1 // pred_check_branch
      %1122 = sbr.rel (0) target = $region45
    $region44: #{tpu_custom_call.1} parent=1 // pred_region
      %1123 = dma.done [#allocation5], 1024
    $region45: #{tpu_custom_call.1} parent=1 // pred_fallthru
      _
    // Predicated region
    $region46: #{tpu_custom_call.1} parent=1 // pred_check
      _
    $region47: #{tpu_custom_call.1} parent=1 // pred_check_branch
      %1125 = sbr.rel (0) target = $region49
    $region48: #{tpu_custom_call.1} parent=1 // pred_region
      %1126 = dma.done [#allocation10], 128
    $region49: #{tpu_custom_call.1} parent=1 // pred_fallthru
      _
    %1127 = vsyncpa [#allocation4], 1
    %1128 = vsyncpa [#allocation7], 1
    %1129 = vsyncpa [#allocation5], 1
    %1130 = vsyncpa [#allocation10], 1

</llo_original>
